<compile_context>
chip_gen: v7x
topology: tpu7x:2x2x1
jax: 0.10.0
libtpu: 0.0.40
codegen_flags: <defaults>
</compile_context>

<pallas_src>
import functools
import math

import jax
import jax.numpy as jnp
import numpy as np
from jax import lax
from jax.experimental import pallas as pl
from jax.experimental.pallas import tpu as pltpu

TEMP = 30.0          # RelationUnit temperature
EPS_L2 = 1e-12       # F.normalize eps
EPS_INST = 1e-5      # InstanceL2Norm eps


# ------------------------------ device probe -------------------------------- #

def _tpu_generation():
    try:
        kind = jax.devices()[0].device_kind.lower()
    except Exception:
        return 6
    for g in (7, 6, 5, 4, 3):
        if f"v{g}" in kind or f"tpu{g}" in kind:
            return g
    return 6


def _single_buffered_spec(shape, index_map):
    """Blocks whose index is constant across q-tiles: single-buffer them
    (reclaims VMEM; meaningful headroom on v7x's 64 MiB)."""
    try:
        return pl.BlockSpec(shape, index_map, pipeline_mode=pl.Buffered(1))
    except TypeError:  # older BlockSpec without pipeline_mode
        return pl.BlockSpec(shape, index_map)


# ----------------------------- Pallas kernel ------------------------------- #

def _instance_l2norm_cm(x, imgs_per_tile, hw, dim, norm_scale):
    """InstanceL2Norm(size_average=True) on a channel-major (dim, TQ) block
    whose columns are ordered (img, h, w).

    factor = scale * sqrt(dim*h*w / (sum_sq + eps))
           = (scale * sqrt(dim*h*w)) * rsqrt(sum_sq + eps)       # EUP, no div
    Per-image grouping is done with iota masks on the (1, TQ) column-sums, so
    no reshapes / lane re-tiling are needed regardless of hw alignment.
    """
    const = norm_scale * math.sqrt(dim * hw)
    sq = jnp.sum(x * x, axis=0, keepdims=True)                 # (1, TQ)
    if imgs_per_tile == 1:
        ss = jnp.sum(sq, axis=1, keepdims=True)                # (1, 1)
        return x * (const * lax.rsqrt(ss + EPS_INST))
    col = lax.broadcasted_iota(jnp.int32, sq.shape, 1)
    ss_cols = jnp.zeros_like(sq)
    for i in range(imgs_per_tile):                             # static, small
        in_img = (col >= i * hw) & (col < (i + 1) * hw)
        ss_i = jnp.sum(jnp.where(in_img, sq, 0.0))
        ss_cols = jnp.where(in_img, ss_i, ss_cols)
    return x * (const * lax.rsqrt(ss_cols + EPS_INST))


def feature_descend_kernel(q_ref, t_ref, p_ref, wk_ref, bk_ref, o_ref,
                           kn_sc, v_sc, *, imgs_per_tile, hw, dim, norm_scale,
                           fuse_mask, bf16_exp):
    f32, bf16 = jnp.float32, jnp.bfloat16
    eps2 = EPS_L2 * EPS_L2

    # ---- key-side work: once per batch row (qi == 0), reused across q-tiles.
    @pl.when(pl.program_id(1) == 0)
    def _hoist_key_side():
        t_dm = t_ref[0]                                           # (dim, Lt) bf16
        posv = p_ref[0]                                           # (1,   Lt) bf16
        kk = lax.dot_general(wk_ref[...], t_dm, (((1,), (0,)), ((), ())),
                             preferred_element_type=f32) + bk_ref[...]  # (kd, Lt)
        ssk = jnp.sum(kk * kk, axis=0, keepdims=True)
        kn_sc[...] = (kk * lax.rsqrt(jnp.maximum(ssk, eps2))).astype(bf16)
        if fuse_mask:
            # value rows + the 1-wide mask row ride one MXU pass (256-wide MXU).
            v_sc[...] = jnp.concatenate([t_dm * posv, posv], axis=0)
        else:
            v_sc[...] = t_dm * posv

    # ---- query projection + F.normalize (TEMP folded into the normalization).
    q_dm = q_ref[0]                                               # (dim, TQ) f32
    qk = lax.dot_general(wk_ref[...], q_dm.astype(bf16), (((1,), (0,)), ((), ())),
                         preferred_element_type=f32) + bk_ref[...]      # (kd, TQ)
    ssq = jnp.sum(qk * qk, axis=0, keepdims=True)
    qn = qk * (TEMP * lax.rsqrt(jnp.maximum(ssq, eps2)))

    # ---- temp-scaled cosine attention: contract the kd (sublane) axis. ------
    scores = lax.dot_general(qn.astype(bf16), kn_sc[...],
                             (((0,), (0,)), ((), ())),
                             preferred_element_type=f32)          # (TQ, Lt)
    m = jnp.max(scores, axis=-1, keepdims=True)
    if bf16_exp:      # v6e/v7x: bf16 EUP — halves exp pressure on the (TQ,Lt) path
        e = jnp.exp((scores - m).astype(bf16))
        denom = jnp.sum(e.astype(f32), axis=-1, keepdims=True)
        attn = e * pl.reciprocal(denom, approx=True).astype(bf16)       # bf16
    else:             # v5e/v4: no bf16 EUP — keep f32 exp
        e = jnp.exp(scores - m)
        denom = jnp.sum(e, axis=-1, keepdims=True)
        attn = (e * pl.reciprocal(denom, approx=True)).astype(bf16)

    # ---- value matmul, channel-major output: contract Lt -> (dim[+1], TQ). --
    vres = lax.dot_general(v_sc[...], attn, (((1,), (1,)), ((), ())),
                           preferred_element_type=f32)
    if fuse_mask:
        tgt3 = vres[:dim]                                         # attn @ (t*pos)
        mask = vres[dim:dim + 1]                                  # attn @ pos
    else:
        tgt3 = vres
        mask = lax.dot_general(p_ref[0], attn, (((1,), (1,)), ((), ())),
                               preferred_element_type=f32)        # (1, TQ)

    tgt2 = _instance_l2norm_cm(q_dm * mask, imgs_per_tile, hw, dim, norm_scale)
    tgt4 = _instance_l2norm_cm(q_dm + tgt3, imgs_per_tile, hw, dim, norm_scale)
    tgt = _instance_l2norm_cm(tgt2 + tgt4, imgs_per_tile, hw, dim, norm_scale)

    o_ref[0] = tgt.astype(o_ref.dtype)   # already channel-major: no transpose


def _pick_imgs_per_tile(num_imgs, hw, target_rows):
    """Whole-image q-tiles so InstanceL2Norm statistics stay tile-local.

    Only accept a tile whose lane extent is 128-aligned (Mosaic block rule and
    lane-dense vst); otherwise fall back to one tile = all images per batch
    element, which is always legal and maximally lane-dense.
    TODO(synk): flash-style online-softmax loop over Lt (third grid axis) for
    very long key lengths, so tfeats / the (TQ, Lt) scores never sit at full
    Lt — needed to stay inside v7x's 64 MiB VMEM at production sizes.
    """
    for d in range(1, num_imgs + 1):
        if num_imgs % d:
            continue
        tq = d * hw
        if tq >= target_rows and tq % 128 == 0:
            return d
    return num_imgs


def feature_descend(sfeats, tfeats, pos, wk, bk, d_model):
    batch, dim, num_imgs, hs, ws = sfeats.shape
    _, _, num_imgt, ht, wt = tfeats.shape
    hw = hs * ws
    Ls = num_imgs * hw
    Lt = num_imgt * ht * wt
    kd = wk.shape[1]

    gen = _tpu_generation()
    wide_mxu = gen >= 6            # 256-wide MXU: fused mask column is free
    bf16_exp = gen >= 6            # bf16 EUP on v6e / v7x
    target_rows = 256 if gen >= 7 else 512    # v7x: 64 MiB VMEM -> smaller q tiles
    vmem_limit = (40 if gen >= 7 else 48) * 1024 * 1024

    # Channel-major reshapes are zero-copy.  tfeats/pos/wk ship as bf16 (only
    # ever consumed on the MXU in bf16); sfeats stays f32 for the residual.
    q_r = sfeats.reshape(batch, dim, Ls)
    t_r = tfeats.reshape(batch, dim, Lt).astype(jnp.bfloat16)
    p_r = pos.reshape(batch, 1, Lt).astype(jnp.bfloat16)
    wk_t = wk.T.astype(jnp.bfloat16)                 # (kd, dim): one-time, tiny
    bk_c = bk.reshape(kd, 1).astype(jnp.float32)     # (kd, 1): broadcast over lanes

    imgs_per_tile = _pick_imgs_per_tile(num_imgs, hw, target_rows)
    n_qt = num_imgs // imgs_per_tile
    tq = imgs_per_tile * hw

    norm_scale = math.sqrt(1.0 / (d_model * 4 * 4))
    kernel = functools.partial(
        feature_descend_kernel,
        imgs_per_tile=imgs_per_tile, hw=hw, dim=dim, norm_scale=norm_scale,
        fuse_mask=wide_mxu, bf16_exp=bf16_exp)

    v_rows = dim + 1 if wide_mxu else dim

    out = pl.pallas_call(
        kernel,
        out_shape=jax.ShapeDtypeStruct((batch, dim, Ls), jnp.float32),
        grid_spec=pltpu.PrefetchScalarGridSpec(
            num_scalar_prefetch=0,
            # batch outer ("parallel": megacore may split batch rows), q-tile
            # inner ("arbitrary": key-side scratch is carried across q-tiles).
            # TODO(synk): if production batch is frequently 1 on v7x, flip the
            # q-tile axis to "parallel" (and drop the hoist) so both TCs work.
            grid=(batch, n_qt),
            in_specs=[
                pl.BlockSpec((1, dim, tq), lambda b, qi: (b, 0, qi)),          # sfeats f32
                _single_buffered_spec((1, dim, Lt), lambda b, qi: (b, 0, 0)),  # tfeats bf16
                _single_buffered_spec((1, 1, Lt), lambda b, qi: (b, 0, 0)),    # pos bf16
                _single_buffered_spec((kd, dim), lambda b, qi: (0, 0)),        # WK^T bf16
                _single_buffered_spec((kd, 1), lambda b, qi: (0, 0)),          # WK bias f32
            ],
            out_specs=pl.BlockSpec((1, dim, tq), lambda b, qi: (b, 0, qi)),
            scratch_shapes=[
                pltpu.VMEM((kd, Lt), jnp.bfloat16),       # normalized keys
                pltpu.VMEM((v_rows, Lt), jnp.bfloat16),   # tfeats*pos [+ pos row]
            ]),
        compiler_params=pltpu.CompilerParams(
            dimension_semantics=("parallel", "arbitrary"),
            vmem_limit_bytes=vmem_limit),
    )(q_r, t_r, p_r, wk_t, bk_c)

    # (batch, dim, Ls) -> (batch, dim, num_imgs, hs, ws): contiguous, free.
    return out.reshape(batch, dim, num_imgs, hs, ws)


# -------------------------- pure-JAX reference ------------------------------ #

def _ref_attn(query, key, value, wk, bk):
    # query (Lq,B,D), key (Lk,B,D), value (Lk,B,Dv)
    wq = query @ wk + bk
    wkk = key @ wk + bk
    wq = wq / jnp.maximum(jnp.linalg.norm(wq, axis=-1, keepdims=True), EPS_L2)
    wkk = wkk / jnp.maximum(jnp.linalg.norm(wkk, axis=-1, keepdims=True), EPS_L2)
    dot = jnp.einsum('qbd,kbd->bqk', wq, wkk) * TEMP
    aff = jax.nn.softmax(dot, axis=-1)
    return jnp.einsum('bqk,kbv->qbv', aff, value)


def _ref_inorm(src, input_shape, scale):
    batch, dim, num_imgs, h, w = input_shape
    x = src.reshape(num_imgs, h, w, batch, dim).transpose(0, 3, 4, 1, 2)
    x = x.reshape(-1, dim, h, w)
    ss = jnp.sum((x * x).reshape(x.shape[0], 1, 1, -1), axis=3, keepdims=True)
    x = x * (scale * jnp.sqrt(dim * h * w / (ss + EPS_INST)))
    x = x.reshape(num_imgs, batch, dim, -1).transpose(0, 3, 1, 2).reshape(-1, batch, dim)
    return x


def reference(sfeats, tfeats, pos, wk, bk, d_model):
    batch, dim, num_imgs, hs, ws = sfeats.shape
    input_shape = sfeats.shape
    _, _, num_imgt, ht, wt = tfeats.shape
    s = jnp.transpose(sfeats.reshape(batch, dim, num_imgs, -1), (2, 3, 0, 1)).reshape(-1, batch, dim)
    t = jnp.transpose(tfeats.reshape(batch, dim, num_imgt, -1), (2, 3, 0, 1)).reshape(-1, batch, dim)
    p = jnp.transpose(pos.reshape(batch, 1, num_imgt, -1), (2, 3, 0, 1)).reshape(-1, batch, 1)
    scale = math.sqrt(1.0 / (d_model * 4 * 4))
    mask = _ref_attn(s, t, p, wk, bk)
    tgt2 = _ref_inorm(s * mask, input_shape, scale)
    tgt3 = _ref_attn(s, t, t * p, wk, bk)
    tgt4 = _ref_inorm(s + tgt3, input_shape, scale)
    tgt = _ref_inorm(tgt2 + tgt4, input_shape, scale)
    return tgt.reshape(num_imgs, hs, ws, batch, dim).transpose(3, 4, 0, 1, 2)


# ---------------------------------- main ------------------------------------ #

if __name__ == "__main__":
    d_model = 128       # feature dim (also key_feature_dim=128 of WK)
    batch, num_imgs, hs, ws = 2, 2, 4, 4
    num_imgt, ht, wt = 2, 4, 4

    key = jax.random.PRNGKey(0)
    k1, k2, k3, k4, k5 = jax.random.split(key, 5)
    sfeats = jax.random.normal(k1, (batch, d_model, num_imgs, hs, ws), jnp.float32)
    tfeats = jax.random.normal(k2, (batch, d_model, num_imgt, ht, wt), jnp.float32)
    pos = jax.random.normal(k3, (batch, 1, num_imgt, ht, wt), jnp.float32)

    # WK: nn.Linear(d_model, 128); stored pre-transposed as (in, out).
    wk = jax.random.normal(k4, (d_model, 128), jnp.float32) * math.sqrt(2.0 / 128.0)
    bk = jax.random.normal(k5, (1, 128), jnp.float32) * 0.1

    out = feature_descend(sfeats, tfeats, pos, wk, bk, d_model)
    jax.block_until_ready(out)

    ref = reference(sfeats, tfeats, pos, wk, bk, d_model)
    # bf16 MXU operands / bf16 exp (f32 accumulation & statistics) vs pure-f32 ref.
    np.testing.assert_allclose(np.asarray(out), np.asarray(ref), rtol=5e-2, atol=5e-3)

    print("KERNEL_OK")
</pallas_src>

<mosaic_0001>
module attributes {stable_mosaic.version = 11 : i64} {
  func.func @feature_descend_kernel(%arg0: i32, %arg1: i32, %arg2: memref<1x128x32xf32, #tpu.memory_space<vmem>>, %arg3: memref<1x128x32xbf16, #tpu.memory_space<vmem>>, %arg4: memref<1x1x32xbf16, #tpu.memory_space<vmem>>, %arg5: memref<128x128xbf16, #tpu.memory_space<vmem>>, %arg6: memref<128x1xf32, #tpu.memory_space<vmem>>, %arg7: memref<1x128x32xf32, #tpu.memory_space<vmem>>, %arg8: memref<128x32xbf16, #tpu.memory_space<vmem>>, %arg9: memref<129x32xbf16, #tpu.memory_space<vmem>>) attributes {dimension_semantics = [#tpu.dimension_semantics<parallel>, #tpu.dimension_semantics<arbitrary>], iteration_bounds = array<i64: 2, 1>, scalar_prefetch = 0 : i64, scratch_operands = 2 : i64, tpu.core_type = #tpu.core_type<tc>, window_params = [{transform_indices = @transform_0, window_bounds = array<i64: 1, 128, 32>}, {pipeline_mode = #tpu.pipeline_mode<synchronous>, transform_indices = @transform_1, window_bounds = array<i64: 1, 128, 32>}, {pipeline_mode = #tpu.pipeline_mode<synchronous>, transform_indices = @transform_2, window_bounds = array<i64: 1, 1, 32>}, {pipeline_mode = #tpu.pipeline_mode<synchronous>, transform_indices = @transform_3, window_bounds = array<i64: 128, 128>}, {pipeline_mode = #tpu.pipeline_mode<synchronous>, transform_indices = @transform_4, window_bounds = array<i64: 128, 1>}, {transform_indices = @transform_5, window_bounds = array<i64: 1, 128, 32>}]} {
    %c0_i32 = arith.constant 0 : i32
    %0 = arith.cmpi eq, %arg1, %c0_i32 : i32
    %1 = arith.extui %0 : i1 to i32
    %c0_i32_0 = arith.constant 0 : i32
    %2 = arith.cmpi ne, %1, %c0_i32_0 : i32
    scf.if %2 {
      %c0_55 = arith.constant 0 : index
      %c0_56 = arith.constant 0 : index
      %c0_57 = arith.constant 0 : index
      %162 = vector.load %arg3[%c0_55, %c0_56, %c0_57] : memref<1x128x32xbf16, #tpu.memory_space<vmem>>, vector<1x128x32xbf16>
      %163 = vector.shape_cast %162 : vector<1x128x32xbf16> to vector<128x32xbf16>
      %c0_58 = arith.constant 0 : index
      %c0_59 = arith.constant 0 : index
      %c0_60 = arith.constant 0 : index
      %164 = vector.load %arg4[%c0_58, %c0_59, %c0_60] : memref<1x1x32xbf16, #tpu.memory_space<vmem>>, vector<1x1x32xbf16>
      %165 = vector.shape_cast %164 : vector<1x1x32xbf16> to vector<1x32xbf16>
      %c0_61 = arith.constant 0 : index
      %c0_62 = arith.constant 0 : index
      %166 = vector.load %arg5[%c0_61, %c0_62] : memref<128x128xbf16, #tpu.memory_space<vmem>>, vector<128x128xbf16>
      %cst_63 = arith.constant dense<0.000000e+00> : vector<128x32xf32>
      %167 = tpu.matmul %166, %163, %cst_63 {dimension_numbers = #tpu.dot_dimension_numbers<[1], [0], [0], [1], [0, 0, 1, 1], [], []>} : vector<128x128xbf16>, vector<128x32xbf16>, vector<128x32xf32> -> vector<128x32xf32>
      %c0_64 = arith.constant 0 : index
      %c0_65 = arith.constant 0 : index
      %168 = vector.load %arg6[%c0_64, %c0_65] : memref<128x1xf32, #tpu.memory_space<vmem>>, vector<128x1xf32>
      %169 = vector.broadcast %168 : vector<128x1xf32> to vector<128x32xf32>
      %170 = arith.addf %167, %169 : vector<128x32xf32>
      %171 = arith.mulf %170, %170 : vector<128x32xf32>
      %cst_66 = arith.constant dense<0.000000e+00> : vector<32xf32>
      %172 = vector.multi_reduction <add>, %171, %cst_66 [0] : vector<128x32xf32> to vector<32xf32>
      %173 = vector.shape_cast %172 : vector<32xf32> to vector<1x32xf32>
      %cst_67 = arith.constant 1.000000e-24 : f32
      %174 = vector.broadcast %cst_67 : f32 to vector<1x32xf32>
      %175 = arith.maximumf %173, %174 : vector<1x32xf32>
      %176 = math.rsqrt %175 : vector<1x32xf32>
      %177 = vector.broadcast %176 : vector<1x32xf32> to vector<128x32xf32>
      %178 = arith.mulf %170, %177 : vector<128x32xf32>
      %179 = arith.truncf %178 : vector<128x32xf32> to vector<128x32xbf16>
      %c0_68 = arith.constant 0 : index
      %c0_69 = arith.constant 0 : index
      %180 = vector.load %arg8[%c0_68, %c0_69] : memref<128x32xbf16, #tpu.memory_space<vmem>>, vector<128x32xbf16>
      tpu.vector_store %arg8[%c0_68, %c0_69], %179 {strides = array<i32>} : memref<128x32xbf16, #tpu.memory_space<vmem>>, vector<128x32xbf16>,
      %181 = vector.broadcast %165 : vector<1x32xbf16> to vector<128x32xbf16>
      %182 = arith.mulf %163, %181 : vector<128x32xbf16>
      %183 = tpu.concatenate %182, %165 in 0 : vector<128x32xbf16>, vector<1x32xbf16> -> vector<129x32xbf16>
      %c0_70 = arith.constant 0 : index
      %c0_71 = arith.constant 0 : index
      %184 = vector.load %arg9[%c0_70, %c0_71] : memref<129x32xbf16, #tpu.memory_space<vmem>>, vector<129x32xbf16>
      tpu.vector_store %arg9[%c0_70, %c0_71], %183 {strides = array<i32>} : memref<129x32xbf16, #tpu.memory_space<vmem>>, vector<129x32xbf16>,
    } else {
    }
    %c0 = arith.constant 0 : index
    %c0_1 = arith.constant 0 : index
    %c0_2 = arith.constant 0 : index
    %3 = vector.load %arg2[%c0, %c0_1, %c0_2] : memref<1x128x32xf32, #tpu.memory_space<vmem>>, vector<1x128x32xf32>
    %4 = vector.shape_cast %3 : vector<1x128x32xf32> to vector<128x32xf32>
    %c0_3 = arith.constant 0 : index
    %c0_4 = arith.constant 0 : index
    %5 = vector.load %arg5[%c0_3, %c0_4] : memref<128x128xbf16, #tpu.memory_space<vmem>>, vector<128x128xbf16>
    %6 = arith.truncf %4 : vector<128x32xf32> to vector<128x32xbf16>
    %cst = arith.constant dense<0.000000e+00> : vector<128x32xf32>
    %7 = tpu.matmul %5, %6, %cst {dimension_numbers = #tpu.dot_dimension_numbers<[1], [0], [0], [1], [0, 0, 1, 1], [], []>} : vector<128x128xbf16>, vector<128x32xbf16>, vector<128x32xf32> -> vector<128x32xf32>
    %c0_5 = arith.constant 0 : index
    %c0_6 = arith.constant 0 : index
    %8 = vector.load %arg6[%c0_5, %c0_6] : memref<128x1xf32, #tpu.memory_space<vmem>>, vector<128x1xf32>
    %9 = vector.broadcast %8 : vector<128x1xf32> to vector<128x32xf32>
    %10 = arith.addf %7, %9 : vector<128x32xf32>
    %11 = arith.mulf %10, %10 : vector<128x32xf32>
    %cst_7 = arith.constant dense<0.000000e+00> : vector<32xf32>
    %12 = vector.multi_reduction <add>, %11, %cst_7 [0] : vector<128x32xf32> to vector<32xf32>
    %13 = vector.shape_cast %12 : vector<32xf32> to vector<1x32xf32>
    %cst_8 = arith.constant 1.000000e-24 : f32
    %14 = vector.broadcast %cst_8 : f32 to vector<1x32xf32>
    %15 = arith.maximumf %13, %14 : vector<1x32xf32>
    %16 = math.rsqrt %15 : vector<1x32xf32>
    %cst_9 = arith.constant 3.000000e+01 : f32
    %17 = vector.broadcast %cst_9 : f32 to vector<1x32xf32>
    %18 = arith.mulf %17, %16 : vector<1x32xf32>
    %19 = vector.broadcast %18 : vector<1x32xf32> to vector<128x32xf32>
    %20 = arith.mulf %10, %19 : vector<128x32xf32>
    %21 = arith.truncf %20 : vector<128x32xf32> to vector<128x32xbf16>
    %c0_10 = arith.constant 0 : index
    %c0_11 = arith.constant 0 : index
    %22 = vector.load %arg8[%c0_10, %c0_11] : memref<128x32xbf16, #tpu.memory_space<vmem>>, vector<128x32xbf16>
    %cst_12 = arith.constant dense<0.000000e+00> : vector<32x32xf32>
    %23 = tpu.matmul %21, %22, %cst_12 {dimension_numbers = #tpu.dot_dimension_numbers<[0], [0], [1], [1], [0, 1, 1, 1], [], []>} : vector<128x32xbf16>, vector<128x32xbf16>, vector<32x32xf32> -> vector<32x32xf32>
    %cst_13 = arith.constant dense<0xFF800000> : vector<32xf32>
    %24 = vector.multi_reduction <maximumf>, %23, %cst_13 [1] : vector<32x32xf32> to vector<32xf32>
    %25 = vector.shape_cast %24 : vector<32xf32> to vector<32x1xf32>
    %26 = vector.broadcast %25 : vector<32x1xf32> to vector<32x32xf32>
    %27 = arith.subf %23, %26 : vector<32x32xf32>
    %28 = arith.truncf %27 : vector<32x32xf32> to vector<32x32xbf16>
    %29 = math.exp %28 : vector<32x32xbf16>
    %30 = arith.extf %29 : vector<32x32xbf16> to vector<32x32xf32>
    %cst_14 = arith.constant dense<0.000000e+00> : vector<32xf32>
    %31 = vector.multi_reduction <add>, %30, %cst_14 [1] : vector<32x32xf32> to vector<32xf32>
    %32 = vector.shape_cast %31 : vector<32xf32> to vector<32x1xf32>
    %33 = tpu.reciprocal %32 {approx = true} : vector<32x1xf32> -> vector<32x1xf32>
    %34 = arith.truncf %33 : vector<32x1xf32> to vector<32x1xbf16>
    %35 = vector.broadcast %34 : vector<32x1xbf16> to vector<32x32xbf16>
    %36 = arith.mulf %29, %35 : vector<32x32xbf16>
    %c0_15 = arith.constant 0 : index
    %c0_16 = arith.constant 0 : index
    %37 = vector.load %arg9[%c0_15, %c0_16] : memref<129x32xbf16, #tpu.memory_space<vmem>>, vector<129x32xbf16>
    %cst_17 = arith.constant dense<0.000000e+00> : vector<129x32xf32>
    %38 = tpu.matmul %37, %36, %cst_17 {dimension_numbers = #tpu.dot_dimension_numbers<[1], [1], [0], [0], [0, 0, 1, 0], [], []>} : vector<129x32xbf16>, vector<32x32xbf16>, vector<129x32xf32> -> vector<129x32xf32>
    %39 = vector.extract_strided_slice %38 {offsets = [0, 0], sizes = [128, 32], strides = [1, 1]} : vector<129x32xf32> to vector<128x32xf32>
    %40 = vector.extract_strided_slice %38 {offsets = [128, 0], sizes = [1, 32], strides = [1, 1]} : vector<129x32xf32> to vector<1x32xf32>
    %41 = vector.broadcast %40 : vector<1x32xf32> to vector<128x32xf32>
    %42 = arith.mulf %4, %41 : vector<128x32xf32>
    %43 = arith.mulf %42, %42 : vector<128x32xf32>
    %cst_18 = arith.constant dense<0.000000e+00> : vector<32xf32>
    %44 = vector.multi_reduction <add>, %43, %cst_18 [0] : vector<128x32xf32> to vector<32xf32>
    %45 = vector.shape_cast %44 : vector<32xf32> to vector<1x32xf32>
    %46 = tpu.iota {dimensions = array<i32: 1>} : vector<1x32xi32>
    %cst_19 = arith.constant 0.000000e+00 : f32
    %47 = vector.broadcast %cst_19 : f32 to vector<1x32xf32>
    %c0_i32_20 = arith.constant 0 : i32
    %48 = vector.broadcast %c0_i32_20 : i32 to vector<1x32xi32>
    %49 = arith.cmpi sge, %46, %48 : vector<1x32xi32>
    %c16_i32 = arith.constant 16 : i32
    %50 = vector.broadcast %c16_i32 : i32 to vector<1x32xi32>
    %51 = arith.cmpi slt, %46, %50 : vector<1x32xi32>
    %52 = arith.andi %49, %51 : vector<1x32xi1>
    %cst_21 = arith.constant 0.000000e+00 : f32
    %53 = vector.broadcast %cst_21 : f32 to vector<1x32xf32>
    %54 = arith.select %52, %45, %53 : vector<1x32xi1>, vector<1x32xf32>
    %55 = vector.shape_cast %54 : vector<1x32xf32> to vector<1x1x32xf32>
    %cst_22 = arith.constant dense<0.000000e+00> : vector<1xf32>
    %56 = vector.multi_reduction <add>, %55, %cst_22 [1, 2] : vector<1x1x32xf32> to vector<1xf32>
    %57 = vector.shape_cast %56 : vector<1xf32> to vector<1x1x1xf32>
    %58 = vector.extract %57[0, 0, 0] : f32 from vector<1x1x1xf32>
    %59 = vector.broadcast %58 : f32 to vector<1x32xf32>
    %60 = arith.select %52, %59, %47 : vector<1x32xi1>, vector<1x32xf32>
    %c16_i32_23 = arith.constant 16 : i32
    %61 = vector.broadcast %c16_i32_23 : i32 to vector<1x32xi32>
    %62 = arith.cmpi sge, %46, %61 : vector<1x32xi32>
    %c32_i32 = arith.constant 32 : i32
    %63 = vector.broadcast %c32_i32 : i32 to vector<1x32xi32>
    %64 = arith.cmpi slt, %46, %63 : vector<1x32xi32>
    %65 = arith.andi %62, %64 : vector<1x32xi1>
    %cst_24 = arith.constant 0.000000e+00 : f32
    %66 = vector.broadcast %cst_24 : f32 to vector<1x32xf32>
    %67 = arith.select %65, %45, %66 : vector<1x32xi1>, vector<1x32xf32>
    %68 = vector.shape_cast %67 : vector<1x32xf32> to vector<1x1x32xf32>
    %cst_25 = arith.constant dense<0.000000e+00> : vector<1xf32>
    %69 = vector.multi_reduction <add>, %68, %cst_25 [1, 2] : vector<1x1x32xf32> to vector<1xf32>
    %70 = vector.shape_cast %69 : vector<1xf32> to vector<1x1x1xf32>
    %71 = vector.extract %70[0, 0, 0] : f32 from vector<1x1x1xf32>
    %72 = vector.broadcast %71 : f32 to vector<1x32xf32>
    %73 = arith.select %65, %72, %60 : vector<1x32xi1>, vector<1x32xf32>
    %cst_26 = arith.constant 9.99999974E-6 : f32
    %74 = vector.broadcast %cst_26 : f32 to vector<1x32xf32>
    %75 = arith.addf %73, %74 : vector<1x32xf32>
    %76 = math.rsqrt %75 : vector<1x32xf32>
    %cst_27 = arith.constant 1.000000e+00 : f32
    %77 = vector.broadcast %cst_27 : f32 to vector<1x32xf32>
    %78 = arith.mulf %77, %76 : vector<1x32xf32>
    %79 = vector.broadcast %78 : vector<1x32xf32> to vector<128x32xf32>
    %80 = arith.mulf %42, %79 : vector<128x32xf32>
    %81 = arith.addf %4, %39 : vector<128x32xf32>
    %82 = arith.mulf %81, %81 : vector<128x32xf32>
    %cst_28 = arith.constant dense<0.000000e+00> : vector<32xf32>
    %83 = vector.multi_reduction <add>, %82, %cst_28 [0] : vector<128x32xf32> to vector<32xf32>
    %84 = vector.shape_cast %83 : vector<32xf32> to vector<1x32xf32>
    %85 = tpu.iota {dimensions = array<i32: 1>} : vector<1x32xi32>
    %cst_29 = arith.constant 0.000000e+00 : f32
    %86 = vector.broadcast %cst_29 : f32 to vector<1x32xf32>
    %c0_i32_30 = arith.constant 0 : i32
    %87 = vector.broadcast %c0_i32_30 : i32 to vector<1x32xi32>
    %88 = arith.cmpi sge, %85, %87 : vector<1x32xi32>
    %c16_i32_31 = arith.constant 16 : i32
    %89 = vector.broadcast %c16_i32_31 : i32 to vector<1x32xi32>
    %90 = arith.cmpi slt, %85, %89 : vector<1x32xi32>
    %91 = arith.andi %88, %90 : vector<1x32xi1>
    %cst_32 = arith.constant 0.000000e+00 : f32
    %92 = vector.broadcast %cst_32 : f32 to vector<1x32xf32>
    %93 = arith.select %91, %84, %92 : vector<1x32xi1>, vector<1x32xf32>
    %94 = vector.shape_cast %93 : vector<1x32xf32> to vector<1x1x32xf32>
    %cst_33 = arith.constant dense<0.000000e+00> : vector<1xf32>
    %95 = vector.multi_reduction <add>, %94, %cst_33 [1, 2] : vector<1x1x32xf32> to vector<1xf32>
    %96 = vector.shape_cast %95 : vector<1xf32> to vector<1x1x1xf32>
    %97 = vector.extract %96[0, 0, 0] : f32 from vector<1x1x1xf32>
    %98 = vector.broadcast %97 : f32 to vector<1x32xf32>
    %99 = arith.select %91, %98, %86 : vector<1x32xi1>, vector<1x32xf32>
    %c16_i32_34 = arith.constant 16 : i32
    %100 = vector.broadcast %c16_i32_34 : i32 to vector<1x32xi32>
    %101 = arith.cmpi sge, %85, %100 : vector<1x32xi32>
    %c32_i32_35 = arith.constant 32 : i32
    %102 = vector.broadcast %c32_i32_35 : i32 to vector<1x32xi32>
    %103 = arith.cmpi slt, %85, %102 : vector<1x32xi32>
    %104 = arith.andi %101, %103 : vector<1x32xi1>
    %cst_36 = arith.constant 0.000000e+00 : f32
    %105 = vector.broadcast %cst_36 : f32 to vector<1x32xf32>
    %106 = arith.select %104, %84, %105 : vector<1x32xi1>, vector<1x32xf32>
    %107 = vector.shape_cast %106 : vector<1x32xf32> to vector<1x1x32xf32>
    %cst_37 = arith.constant dense<0.000000e+00> : vector<1xf32>
    %108 = vector.multi_reduction <add>, %107, %cst_37 [1, 2] : vector<1x1x32xf32> to vector<1xf32>
    %109 = vector.shape_cast %108 : vector<1xf32> to vector<1x1x1xf32>
    %110 = vector.extract %109[0, 0, 0] : f32 from vector<1x1x1xf32>
    %111 = vector.broadcast %110 : f32 to vector<1x32xf32>
    %112 = arith.select %104, %111, %99 : vector<1x32xi1>, vector<1x32xf32>
    %cst_38 = arith.constant 9.99999974E-6 : f32
    %113 = vector.broadcast %cst_38 : f32 to vector<1x32xf32>
    %114 = arith.addf %112, %113 : vector<1x32xf32>
    %115 = math.rsqrt %114 : vector<1x32xf32>
    %cst_39 = arith.constant 1.000000e+00 : f32
    %116 = vector.broadcast %cst_39 : f32 to vector<1x32xf32>
    %117 = arith.mulf %116, %115 : vector<1x32xf32>
    %118 = vector.broadcast %117 : vector<1x32xf32> to vector<128x32xf32>
    %119 = arith.mulf %81, %118 : vector<128x32xf32>
    %120 = arith.addf %80, %119 : vector<128x32xf32>
    %121 = arith.mulf %120, %120 : vector<128x32xf32>
    %cst_40 = arith.constant dense<0.000000e+00> : vector<32xf32>
    %122 = vector.multi_reduction <add>, %121, %cst_40 [0] : vector<128x32xf32> to vector<32xf32>
    %123 = vector.shape_cast %122 : vector<32xf32> to vector<1x32xf32>
    %124 = tpu.iota {dimensions = array<i32: 1>} : vector<1x32xi32>
    %cst_41 = arith.constant 0.000000e+00 : f32
    %125 = vector.broadcast %cst_41 : f32 to vector<1x32xf32>
    %c0_i32_42 = arith.constant 0 : i32
    %126 = vector.broadcast %c0_i32_42 : i32 to vector<1x32xi32>
    %127 = arith.cmpi sge, %124, %126 : vector<1x32xi32>
    %c16_i32_43 = arith.constant 16 : i32
    %128 = vector.broadcast %c16_i32_43 : i32 to vector<1x32xi32>
    %129 = arith.cmpi slt, %124, %128 : vector<1x32xi32>
    %130 = arith.andi %127, %129 : vector<1x32xi1>
    %cst_44 = arith.constant 0.000000e+00 : f32
    %131 = vector.broadcast %cst_44 : f32 to vector<1x32xf32>
    %132 = arith.select %130, %123, %131 : vector<1x32xi1>, vector<1x32xf32>
    %133 = vector.shape_cast %132 : vector<1x32xf32> to vector<1x1x32xf32>
    %cst_45 = arith.constant dense<0.000000e+00> : vector<1xf32>
    %134 = vector.multi_reduction <add>, %133, %cst_45 [1, 2] : vector<1x1x32xf32> to vector<1xf32>
    %135 = vector.shape_cast %134 : vector<1xf32> to vector<1x1x1xf32>
    %136 = vector.extract %135[0, 0, 0] : f32 from vector<1x1x1xf32>
    %137 = vector.broadcast %136 : f32 to vector<1x32xf32>
    %138 = arith.select %130, %137, %125 : vector<1x32xi1>, vector<1x32xf32>
    %c16_i32_46 = arith.constant 16 : i32
    %139 = vector.broadcast %c16_i32_46 : i32 to vector<1x32xi32>
    %140 = arith.cmpi sge, %124, %139 : vector<1x32xi32>
    %c32_i32_47 = arith.constant 32 : i32
    %141 = vector.broadcast %c32_i32_47 : i32 to vector<1x32xi32>
    %142 = arith.cmpi slt, %124, %141 : vector<1x32xi32>
    %143 = arith.andi %140, %142 : vector<1x32xi1>
    %cst_48 = arith.constant 0.000000e+00 : f32
    %144 = vector.broadcast %cst_48 : f32 to vector<1x32xf32>
    %145 = arith.select %143, %123, %144 : vector<1x32xi1>, vector<1x32xf32>
    %146 = vector.shape_cast %145 : vector<1x32xf32> to vector<1x1x32xf32>
    %cst_49 = arith.constant dense<0.000000e+00> : vector<1xf32>
    %147 = vector.multi_reduction <add>, %146, %cst_49 [1, 2] : vector<1x1x32xf32> to vector<1xf32>
    %148 = vector.shape_cast %147 : vector<1xf32> to vector<1x1x1xf32>
    %149 = vector.extract %148[0, 0, 0] : f32 from vector<1x1x1xf32>
    %150 = vector.broadcast %149 : f32 to vector<1x32xf32>
    %151 = arith.select %143, %150, %138 : vector<1x32xi1>, vector<1x32xf32>
    %cst_50 = arith.constant 9.99999974E-6 : f32
    %152 = vector.broadcast %cst_50 : f32 to vector<1x32xf32>
    %153 = arith.addf %151, %152 : vector<1x32xf32>
    %154 = math.rsqrt %153 : vector<1x32xf32>
    %cst_51 = arith.constant 1.000000e+00 : f32
    %155 = vector.broadcast %cst_51 : f32 to vector<1x32xf32>
    %156 = arith.mulf %155, %154 : vector<1x32xf32>
    %157 = vector.broadcast %156 : vector<1x32xf32> to vector<128x32xf32>
    %158 = arith.mulf %120, %157 : vector<128x32xf32>
    %c0_52 = arith.constant 0 : index
    %c0_53 = arith.constant 0 : index
    %c0_54 = arith.constant 0 : index
    %159 = vector.load %arg7[%c0_52, %c0_53, %c0_54] : memref<1x128x32xf32, #tpu.memory_space<vmem>>, vector<1x128x32xf32>
    %160 = vector.shape_cast %159 : vector<1x128x32xf32> to vector<128x32xf32>
    %161 = vector.shape_cast %158 : vector<128x32xf32> to vector<1x128x32xf32>
    tpu.vector_store %arg7[%c0_52, %c0_53, %c0_54], %161 {strides = array<i32>} : memref<1x128x32xf32, #tpu.memory_space<vmem>>, vector<1x128x32xf32>,
    return
  }
  func.func @transform_0(%arg0: i32, %arg1: i32) -> (i32, i32, i32) {
    %c0_i32 = arith.constant 0 : i32
    %c0_i32_0 = arith.constant 0 : i32
    return %arg0, %c0_i32, %arg1 : i32, i32, i32
  }
  func.func @transform_1(%arg0: i32, %arg1: i32) -> (i32, i32, i32) {
    %c0_i32 = arith.constant 0 : i32
    %c0_i32_0 = arith.constant 0 : i32
    %c0_i32_1 = arith.constant 0 : i32
    return %arg0, %c0_i32, %c0_i32_0 : i32, i32, i32
  }
  func.func @transform_2(%arg0: i32, %arg1: i32) -> (i32, i32, i32) {
    %c0_i32 = arith.constant 0 : i32
    %c0_i32_0 = arith.constant 0 : i32
    %c0_i32_1 = arith.constant 0 : i32
    return %arg0, %c0_i32, %c0_i32_0 : i32, i32, i32
  }
  func.func @transform_3(%arg0: i32, %arg1: i32) -> (i32, i32) {
    %c0_i32 = arith.constant 0 : i32
    %c0_i32_0 = arith.constant 0 : i32
    %c0_i32_1 = arith.constant 0 : i32
    return %c0_i32, %c0_i32_0 : i32, i32
  }
  func.func @transform_4(%arg0: i32, %arg1: i32) -> (i32, i32) {
    %c0_i32 = arith.constant 0 : i32
    %c0_i32_0 = arith.constant 0 : i32
    %c0_i32_1 = arith.constant 0 : i32
    return %c0_i32, %c0_i32_0 : i32, i32
  }
  func.func @transform_5(%arg0: i32, %arg1: i32) -> (i32, i32, i32) {
    %c0_i32 = arith.constant 0 : i32
    %c0_i32_0 = arith.constant 0 : i32
    return %arg0, %c0_i32, %arg1 : i32, i32, i32
  }
}

</mosaic_0001>

<llo_original>
// kernel: tpu_custom_call.1
$region0: #{tpu_custom_call.1}
  #allocation0 [shape = 'u32[]', space=smem, size = 0x4, offset = 0x4, fixed_abs, tag = 'smem constant byte address 0x4 - core index']
  #allocation1 [shape = 'u32[144,128]{1,0:T(1,128)}', space=vmem, size = 0x12000, scoped, tag = 'internal scratch']
  #allocation2 [shape = 'bf16[128,32]{1,0:T(16,128)(2,1)}', space=vmem, size = 0x8000, scoped, tag = 'scratch operand']
  #allocation3 [shape = 'bf16[129,32]{1,0:T(8,128)(2,1)}', space=vmem, size = 0x8800, scoped, tag = 'scratch operand']
  %s0 = inlined_call_operand.vmem [shape: f32[2,128,32], index: 0, kind: input, shape index: {}]
  %s1 = inlined_call_operand.vmem [shape: bf16[2,128,32], index: 1, kind: input, shape index: {}]
  %s2 = inlined_call_operand.vmem [shape: bf16[2,1,32], index: 2, kind: input, shape index: {}]
  %s3 = inlined_call_operand.vmem [shape: bf16[128,128], index: 3, kind: input, shape index: {}]
  %s4 = inlined_call_operand.vmem [shape: f32[128,1], index: 4, kind: input, shape index: {}]
  %s5 = inlined_call_operand.vmem [shape: f32[2,128,32], index: 5, kind: output, shape index: {}]
  %s6 = sld [smem:[#allocation0]]
  $region57: #{tpu_custom_call.1} parent=0
    _
  %s8 = ssub.s32 1, %s6
  %s9 = scalar_select 0, %s8, %s6
  loop: start=0, step=1, limit=4
  $region2: #{tpu_custom_call.1} parent=0 // loop_pre_header
    _
  $region3: #{tpu_custom_call.1} parent=0 // loop_header
    %s11 = sphi 0, %s15
    %p12 = scmp.ge.s32.totalorder %s11, 4
    %s18 = sphi 0, %s30
    %s19 = sphi 0, %s26
    %s20 = sphi 0, %s18
    %s21 = sphi 0, %s19
    %s22 = sphi 0, %s20
    %s23 = sphi 0, %s21
    %s35 = sphi 0, %s37
    %s38 = sphi 0, %s35
    %s39 = sphi 0, %s38
    %s55 = sphi 0, %s39
    %s61 = sphi 0, %s63
    %s64 = sphi 0, %s61
    %s65 = sphi 0, %s64
    %s81 = sphi 0, %s65
    %s87 = sphi 0, %s89
    %s90 = sphi 0, %s87
    %s91 = sphi 0, %s90
    %s107 = sphi 0, %s91
    %s111 = sphi 0, %s111
    %s113 = sphi 0, %s111
    %s114 = sphi 0, %s113
    %s128 = sphi 0, %s114
    %s132 = sphi 0, %s132
    %s134 = sphi 0, %s132
    %s135 = sphi 0, %s134
    %s149 = sphi 0, %s135
    %s157 = sphi 0, %s159
    %s160 = sphi 0, %s157
    %s161 = sphi 0, %s160
    %s177 = sphi 0, %s161
  $region4: #{tpu_custom_call.1} parent=0 // loop_header_branch
    %14 = sbr.rel (%p12) target = $region8
  $region5: #{tpu_custom_call.1} parent=0 // loop_body
    %s16 = ssub.s32 %s11, 1
    %s17 = ssub.s32 %s11, 2
    %s24 = sadd.s32 1, %s19
    %p25 = scmp.ge.s32.totalorder %s24, 1
    %s26 = scalar_select %p25, 0, %s24
    %s27 = sadd.s32 1, %s18
    %s28 = scalar_select %p25, %s27, %s18
    %p29 = scmp.ge.s32.totalorder %s28, 2
    %s30 = scalar_select %p29, 0, %s28
    %s31 = ssub.s32 %s18, %s30
    %s32 = ssub.s32 %s19, %s26
    %s33 = sor.u32 %s31, %s32
    %p34 = scmp.eq.s32.totalorder %s33, 0
    %s36 = sadd.s32 %s35, 1
    %s37 = scalar_select %p34, %s35, %s36
    %p40 = pneg %p34
    %p41 = scmp.eq.s32.totalorder %s11, 1
    %p42 = por %p40, %p41
    %p43 = scmp.ne.s32.totalorder %s35, %s38
    %p44 = scmp.eq.s32.totalorder %s11, 0
    %p45 = por %p43, %p44
    %p46 = scmp.ne.s32.totalorder %s35, %s38
    %p47 = scmp.eq.s32.totalorder %s16, 1
    %p48 = por %p46, %p47
    %p49 = scmp.ne.s32.totalorder %s38, %s39
    %p50 = scmp.eq.s32.totalorder %s16, 0
    %p51 = por %p49, %p50
    %p52 = scmp.ne.s32.totalorder %s38, %s39
    %p53 = scmp.eq.s32.totalorder %s17, 1
    %p54 = por %p52, %p53
    %p56 = scmp.ne.s32.totalorder %s39, %s55
    %p57 = scmp.eq.s32.totalorder %s17, 0
    %p58 = por %p56, %p57
    %s59 = ssub.s32 %s18, %s30
    %p60 = scmp.eq.s32.totalorder %s59, 0
    %s62 = sadd.s32 %s61, 1
    %s63 = scalar_select %p60, %s61, %s62
    %p66 = pneg %p60
    %p67 = scmp.eq.s32.totalorder %s11, 1
    %p68 = por %p66, %p67
    %p69 = scmp.ne.s32.totalorder %s61, %s64
    %p70 = scmp.eq.s32.totalorder %s11, 0
    %p71 = por %p69, %p70
    %p72 = scmp.ne.s32.totalorder %s61, %s64
    %p73 = scmp.eq.s32.totalorder %s16, 1
    %p74 = por %p72, %p73
    %p75 = scmp.ne.s32.totalorder %s64, %s65
    %p76 = scmp.eq.s32.totalorder %s16, 0
    %p77 = por %p75, %p76
    %p78 = scmp.ne.s32.totalorder %s64, %s65
    %p79 = scmp.eq.s32.totalorder %s17, 1
    %p80 = por %p78, %p79
    %p82 = scmp.ne.s32.totalorder %s65, %s81
    %p83 = scmp.eq.s32.totalorder %s17, 0
    %p84 = por %p82, %p83
    %s85 = ssub.s32 %s18, %s30
    %p86 = scmp.eq.s32.totalorder %s85, 0
    %s88 = sadd.s32 %s87, 1
    %s89 = scalar_select %p86, %s87, %s88
    %p92 = pneg %p86
    %p93 = scmp.eq.s32.totalorder %s11, 1
    %p94 = por %p92, %p93
    %p95 = scmp.ne.s32.totalorder %s87, %s90
    %p96 = scmp.eq.s32.totalorder %s11, 0
    %p97 = por %p95, %p96
    %p98 = scmp.ne.s32.totalorder %s87, %s90
    %p99 = scmp.eq.s32.totalorder %s16, 1
    %p100 = por %p98, %p99
    %p101 = scmp.ne.s32.totalorder %s90, %s91
    %p102 = scmp.eq.s32.totalorder %s16, 0
    %p103 = por %p101, %p102
    %p104 = scmp.ne.s32.totalorder %s90, %s91
    %p105 = scmp.eq.s32.totalorder %s17, 1
    %p106 = por %p104, %p105
    %p108 = scmp.ne.s32.totalorder %s91, %s107
    %p109 = scmp.eq.s32.totalorder %s17, 0
    %p110 = por %p108, %p109
    %s112 = sadd.s32 %s111, 1
    %p115 = scmp.eq.s32.totalorder %s11, 1
    %p116 = scmp.ne.s32.totalorder %s111, %s113
    %p117 = scmp.eq.s32.totalorder %s11, 0
    %p118 = por %p116, %p117
    %p119 = scmp.ne.s32.totalorder %s111, %s113
    %p120 = scmp.eq.s32.totalorder %s16, 1
    %p121 = por %p119, %p120
    %p122 = scmp.ne.s32.totalorder %s113, %s114
    %p123 = scmp.eq.s32.totalorder %s16, 0
    %p124 = por %p122, %p123
    %p125 = scmp.ne.s32.totalorder %s113, %s114
    %p126 = scmp.eq.s32.totalorder %s17, 1
    %p127 = por %p125, %p126
    %p129 = scmp.ne.s32.totalorder %s114, %s128
    %p130 = scmp.eq.s32.totalorder %s17, 0
    %p131 = por %p129, %p130
    %s133 = sadd.s32 %s132, 1
    %p136 = scmp.eq.s32.totalorder %s11, 1
    %p137 = scmp.ne.s32.totalorder %s132, %s134
    %p138 = scmp.eq.s32.totalorder %s11, 0
    %p139 = por %p137, %p138
    %p140 = scmp.ne.s32.totalorder %s132, %s134
    %p141 = scmp.eq.s32.totalorder %s16, 1
    %p142 = por %p140, %p141
    %p143 = scmp.ne.s32.totalorder %s134, %s135
    %p144 = scmp.eq.s32.totalorder %s16, 0
    %p145 = por %p143, %p144
    %p146 = scmp.ne.s32.totalorder %s134, %s135
    %p147 = scmp.eq.s32.totalorder %s17, 1
    %p148 = por %p146, %p147
    %p150 = scmp.ne.s32.totalorder %s135, %s149
    %p151 = scmp.eq.s32.totalorder %s17, 0
    %p152 = por %p150, %p151
    %s153 = ssub.s32 %s18, %s30
    %s154 = ssub.s32 %s19, %s26
    %s155 = sor.u32 %s153, %s154
    %p156 = scmp.eq.s32.totalorder %s155, 0
    %s158 = sadd.s32 %s157, 1
    %s159 = scalar_select %p156, %s157, %s158
    %p162 = pneg %p156
    %p163 = scmp.eq.s32.totalorder %s11, 1
    %p164 = por %p162, %p163
    %p165 = scmp.ne.s32.totalorder %s157, %s160
    %p166 = scmp.eq.s32.totalorder %s11, 0
    %p167 = por %p165, %p166
    %p168 = scmp.ne.s32.totalorder %s157, %s160
    %p169 = scmp.eq.s32.totalorder %s16, 1
    %p170 = por %p168, %p169
    %p171 = scmp.ne.s32.totalorder %s160, %s161
    %p172 = scmp.eq.s32.totalorder %s16, 0
    %p173 = por %p171, %p172
    %p174 = scmp.ne.s32.totalorder %s160, %s161
    %p175 = scmp.eq.s32.totalorder %s17, 1
    %p176 = por %p174, %p175
    %p178 = scmp.ne.s32.totalorder %s161, %s177
    %p179 = scmp.eq.s32.totalorder %s17, 0
    %p180 = por %p178, %p179
    %p181 = scmp.le.s32.totalorder 1, %s11
    %p182 = scmp.lt.s32.totalorder %s11, 3
    %p183 = pnand %p181, %p182
    %p184 = pneg %p183
    // Predicated region
    $region9: #{tpu_custom_call.1} parent=5 // pred_check
      _
    $region10: #{tpu_custom_call.1} parent=5 // pred_check_branch
      %186 = sbr.rel (%p183) target = $region12
    $region11: #{tpu_custom_call.1} parent=5 // pred_region
      %s187 = ssub.s32 %s11, 1
      // Predicated region
      $region13: #{tpu_custom_call.1} parent=11 // pred_check
        %p188 = pneg %p77
      $region14: #{tpu_custom_call.1} parent=11 // pred_check_branch
        %190 = sbr.rel (%p188) target = $region16
      $region15: #{tpu_custom_call.1} parent=11 // pred_region
        %p191 = scmp.lt.s32.totalorder %s20, 1
        %s192 = scalar_select %p191, %s20, 1
        %s193 = smul.addr %s192, 16
        %s194 = smul.addr %s193, 4
        %s195 = scalar_lea.vmem %s1, %s194
      $region16: #{tpu_custom_call.1} parent=11 // pred_fallthru
        _
      // Predicated region
      $region17: #{tpu_custom_call.1} parent=11 // pred_check
        %p196 = pneg %p103
      $region18: #{tpu_custom_call.1} parent=11 // pred_check_branch
        %198 = sbr.rel (%p196) target = $region20
      $region19: #{tpu_custom_call.1} parent=11 // pred_region
        %p199 = scmp.lt.s32.totalorder %s20, 1
        %s200 = scalar_select %p199, %s20, 1
        %s201 = scalar_lea.vmem %s2, %s200
      $region20: #{tpu_custom_call.1} parent=11 // pred_fallthru
        _
      // Predicated region
      $region21: #{tpu_custom_call.1} parent=11 // pred_check
        %p202 = pneg %p124
      $region22: #{tpu_custom_call.1} parent=11 // pred_check_branch
        %204 = sbr.rel (%p202) target = $region24
      $region23: #{tpu_custom_call.1} parent=11 // pred_region
        _
      $region24: #{tpu_custom_call.1} parent=11 // pred_fallthru
        _
      // Predicated region
      $region25: #{tpu_custom_call.1} parent=11 // pred_check
        %p205 = pneg %p145
      $region26: #{tpu_custom_call.1} parent=11 // pred_check_branch
        %207 = sbr.rel (%p205) target = $region28
      $region27: #{tpu_custom_call.1} parent=11 // pred_region
        _
      $region28: #{tpu_custom_call.1} parent=11 // pred_fallthru
        _
    $region12: #{tpu_custom_call.1} parent=5 // pred_fallthru
      _
    %p208 = scmp.lt.s32.totalorder %s11, 2
    // Predicated region
    $region29: #{tpu_custom_call.1} parent=5 // pred_check
      %p209 = pneg %p208
    $region30: #{tpu_custom_call.1} parent=5 // pred_check_branch
      %211 = sbr.rel (%p209) target = $region32
    $region31: #{tpu_custom_call.1} parent=5 // pred_region
      // Predicated region
      $region33: #{tpu_custom_call.1} parent=31 // pred_check
        %p212 = pneg %p45
      $region34: #{tpu_custom_call.1} parent=31 // pred_check_branch
        %214 = sbr.rel (%p212) target = $region36
      $region35: #{tpu_custom_call.1} parent=31 // pred_region
        %p215 = scmp.lt.s32.totalorder %s18, 1
        %s216 = scalar_select %p215, %s18, 1
        %p217 = scmp.lt.s32.totalorder %s19, 0
        %s218 = scalar_select %p217, %s19, 0
        %s219 = smul.addr %s216, 16
        %s220 = sadd.s32 %s218, %s219
        %s221 = smul.addr %s220, 8
        %s222 = scalar_lea.vmem %s0, %s221
      $region36: #{tpu_custom_call.1} parent=31 // pred_fallthru
        _
    $region32: #{tpu_custom_call.1} parent=5 // pred_fallthru
      _
    %p223 = scmp.le.s32.totalorder 1, %s11
    %p224 = scmp.lt.s32.totalorder %s11, 3
    %p225 = pnand %p223, %p224
    %p226 = pneg %p225
    // Predicated region
    $region37: #{tpu_custom_call.1} parent=5 // pred_check
      _
    $region38: #{tpu_custom_call.1} parent=5 // pred_check_branch
      %228 = sbr.rel (%p225) target = $region40
    $region39: #{tpu_custom_call.1} parent=5 // pred_region
      %s229 = ssub.s32 %s11, 1
      %p230 = scmp.lt.s32.totalorder %s20, 1
      %s231 = scalar_select %p230, %s20, 1
      %p232 = scmp.lt.s32.totalorder %s21, 0
      %s233 = scalar_select %p232, %s21, 0
      %s234 = smul.addr %s231, 16
      %s235 = sadd.s32 %s233, %s234
      %s236 = smul.addr %s235, 8
      %s237 = scalar_lea.vmem %s0, %s236
      %p238 = pneg %p51
      %p239 = pneg %p48
      %p240 = scmp.lt.s32.totalorder %s20, 1
      %s241 = scalar_select %p240, %s20, 1
      %s242 = smul.addr %s241, 16
      %s243 = smul.addr %s242, 4
      %s244 = scalar_lea.vmem %s1, %s243
      %p245 = pneg %p77
      %p246 = pneg %p74
      %p247 = scmp.lt.s32.totalorder %s20, 1
      %s248 = scalar_select %p247, %s20, 1
      %s249 = scalar_lea.vmem %s2, %s248
      %p250 = pneg %p103
      %p251 = pneg %p100
      %p252 = pneg %p124
      %p253 = pneg %p121
      %p254 = pneg %p145
      %p255 = pneg %p142
      %p256 = pneg %p173
      %p257 = pneg %p170
      %p258 = scmp.lt.s32.totalorder %s20, 1
      %s259 = scalar_select %p258, %s20, 1
      %p260 = scmp.lt.s32.totalorder %s21, 0
      %s261 = scalar_select %p260, %s21, 0
      %s262 = smul.addr %s259, 16
      %s263 = sadd.s32 %s261, %s262
      %s264 = smul.addr %s263, 8
      %s265 = scalar_lea.vmem %s5, %s264
      %p266 = scmp.lt.s32.totalorder %s20, 1
      %s267 = scalar_select %p266, %s20, 1
      %p268 = scmp.lt.s32.totalorder %s21, 0
      %s269 = scalar_select %p268, %s21, 0
      %s270 = smul.addr %s267, 16
      %s271 = sadd.s32 %s269, %s270
      %s272 = smul.addr %s271, 8
      %s273 = scalar_lea.vmem %s0, %s272
      %p274 = scmp.lt.s32.totalorder %s20, 1
      %s275 = scalar_select %p274, %s20, 1
      %s276 = smul.addr %s275, 16
      %s277 = smul.addr %s276, 4
      %s278 = scalar_lea.vmem %s1, %s277
      %p279 = scmp.lt.s32.totalorder %s20, 1
      %s280 = scalar_select %p279, %s20, 1
      %s281 = scalar_lea.vmem %s2, %s280
      %p282 = scmp.lt.s32.totalorder %s20, 1
      %s283 = scalar_select %p282, %s20, 1
      %p284 = scmp.lt.s32.totalorder %s21, 0
      %s285 = scalar_select %p284, %s21, 0
      %s286 = smul.addr %s283, 16
      %s287 = sadd.s32 %s285, %s286
      %s288 = smul.addr %s287, 8
      %s289 = scalar_lea.vmem %s5, %s288
      %p291 = scmp.eq.s32.totalorder %s21, 0
      // Predicated region
      $region41: #{tpu_custom_call.1} parent=39 // pred_check
        %p292 = pneg %p291
      $region42: #{tpu_custom_call.1} parent=39 // pred_check_branch
        %294 = sbr.rel (%p292) target = $region44
      $region43: #{tpu_custom_call.1} parent=39 // pred_region
        %v295 = vld [vmem:[%s278] sm:$0xf]
        %v296 = vld [vmem:[%s278 + $0x4] sm:$0xf]
        %v297 = vld [vmem:[%s278 + $0x8] sm:$0xf]
        %v298 = vld [vmem:[%s278 + $0xc] sm:$0xf]
        %v299 = vld [vmem:[%s278 + $0x10] sm:$0xf]
        %v300 = vld [vmem:[%s278 + $0x14] sm:$0xf]
        %v301 = vld [vmem:[%s278 + $0x18] sm:$0xf]
        %v302 = vld [vmem:[%s278 + $0x1c] sm:$0xf]
        %v303 = vld [vmem:[%s278 + $0x20] sm:$0xf]
        %v304 = vld [vmem:[%s278 + $0x24] sm:$0xf]
        %v305 = vld [vmem:[%s278 + $0x28] sm:$0xf]
        %v306 = vld [vmem:[%s278 + $0x2c] sm:$0xf]
        %v307 = vld [vmem:[%s278 + $0x30] sm:$0xf]
        %v308 = vld [vmem:[%s278 + $0x34] sm:$0xf]
        %v309 = vld [vmem:[%s278 + $0x38] sm:$0xf]
        %v310 = vld [vmem:[%s278 + $0x3c] sm:$0xf]
        %v311 = vld [vmem:[%s281] sm:$0x1]
        %v312 = vld [vmem:[%s3] sm:$0xf]
        %v313 = vld [vmem:[%s3 + $0x4] sm:$0xf]
        %v314 = vld [vmem:[%s3 + $0x8] sm:$0xf]
        %v315 = vld [vmem:[%s3 + $0xc] sm:$0xf]
        %v316 = vld [vmem:[%s3 + $0x10] sm:$0xf]
        %v317 = vld [vmem:[%s3 + $0x14] sm:$0xf]
        %v318 = vld [vmem:[%s3 + $0x18] sm:$0xf]
        %v319 = vld [vmem:[%s3 + $0x1c] sm:$0xf]
        %v320 = vld [vmem:[%s3 + $0x20] sm:$0xf]
        %v321 = vld [vmem:[%s3 + $0x24] sm:$0xf]
        %v322 = vld [vmem:[%s3 + $0x28] sm:$0xf]
        %v323 = vld [vmem:[%s3 + $0x2c] sm:$0xf]
        %v324 = vld [vmem:[%s3 + $0x30] sm:$0xf]
        %v325 = vld [vmem:[%s3 + $0x34] sm:$0xf]
        %v326 = vld [vmem:[%s3 + $0x38] sm:$0xf]
        %v327 = vld [vmem:[%s3 + $0x3c] sm:$0xf]
        %v328 = vld [vmem:[%s4] sm:$0xff]
        %v329 = vld [vmem:[%s4 + $0x8] sm:$0xff]
        %v330 = vld [vmem:[%s4 + $0x10] sm:$0xff]
        %v331 = vld [vmem:[%s4 + $0x18] sm:$0xff]
        %v332 = vld [vmem:[%s4 + $0x20] sm:$0xff]
        %v333 = vld [vmem:[%s4 + $0x28] sm:$0xff]
        %v334 = vld [vmem:[%s4 + $0x30] sm:$0xff]
        %v335 = vld [vmem:[%s4 + $0x38] sm:$0xff]
        %v336 = vld [vmem:[%s4 + $0x40] sm:$0xff]
        %v337 = vld [vmem:[%s4 + $0x48] sm:$0xff]
        %v338 = vld [vmem:[%s4 + $0x50] sm:$0xff]
        %v339 = vld [vmem:[%s4 + $0x58] sm:$0xff]
        %v340 = vld [vmem:[%s4 + $0x60] sm:$0xff]
        %v341 = vld [vmem:[%s4 + $0x68] sm:$0xff]
        %v342 = vld [vmem:[%s4 + $0x70] sm:$0xff]
        %v343 = vld [vmem:[%s4 + $0x78] sm:$0xff]
        %345 = vset.pattern.permute.xlu0 0
        %346 = vperm.xlu0 %345, %v328
        %v347 = vpop.permute.xlu0 %346
        %350 = vset.pattern.permute.xlu0 0
        %351 = vperm.xlu0 %350, %v329
        %v352 = vpop.permute.xlu0 %351
        %355 = vset.pattern.permute.xlu0 0
        %356 = vperm.xlu0 %355, %v330
        %v357 = vpop.permute.xlu0 %356
        %360 = vset.pattern.permute.xlu0 0
        %361 = vperm.xlu0 %360, %v331
        %v362 = vpop.permute.xlu0 %361
        %365 = vset.pattern.permute.xlu0 0
        %366 = vperm.xlu0 %365, %v332
        %v367 = vpop.permute.xlu0 %366
        %370 = vset.pattern.permute.xlu0 0
        %371 = vperm.xlu0 %370, %v333
        %v372 = vpop.permute.xlu0 %371
        %375 = vset.pattern.permute.xlu0 0
        %376 = vperm.xlu0 %375, %v334
        %v377 = vpop.permute.xlu0 %376
        %380 = vset.pattern.permute.xlu0 0
        %381 = vperm.xlu0 %380, %v335
        %v382 = vpop.permute.xlu0 %381
        %385 = vset.pattern.permute.xlu0 0
        %386 = vperm.xlu0 %385, %v336
        %v387 = vpop.permute.xlu0 %386
        %390 = vset.pattern.permute.xlu0 0
        %391 = vperm.xlu0 %390, %v337
        %v392 = vpop.permute.xlu0 %391
        %395 = vset.pattern.permute.xlu0 0
        %396 = vperm.xlu0 %395, %v338
        %v397 = vpop.permute.xlu0 %396
        %400 = vset.pattern.permute.xlu0 0
        %401 = vperm.xlu0 %400, %v339
        %v402 = vpop.permute.xlu0 %401
        %405 = vset.pattern.permute.xlu0 0
        %406 = vperm.xlu0 %405, %v340
        %v407 = vpop.permute.xlu0 %406
        %410 = vset.pattern.permute.xlu0 0
        %411 = vperm.xlu0 %410, %v341
        %v412 = vpop.permute.xlu0 %411
        %415 = vset.pattern.permute.xlu0 0
        %416 = vperm.xlu0 %415, %v342
        %v417 = vpop.permute.xlu0 %416
        %420 = vset.pattern.permute.xlu0 0
        %421 = vperm.xlu0 %420, %v343
        %v422 = vpop.permute.xlu0 %421
        %v440 = vunpack.c.l.b16 %v312
        %v441 = vunpack.c.l.b16 %v313
        %v442 = vunpack.c.l.b16 %v314
        %v443 = vunpack.c.l.b16 %v315
        %v444 = vunpack.c.l.b16 %v316
        %v445 = vunpack.c.l.b16 %v317
        %v446 = vunpack.c.l.b16 %v318
        %v447 = vunpack.c.l.b16 %v319
        %v448 = vunpack.c.l.b16 %v320
        %v449 = vunpack.c.l.b16 %v321
        %v450 = vunpack.c.l.b16 %v322
        %v451 = vunpack.c.l.b16 %v323
        %v452 = vunpack.c.l.b16 %v324
        %v453 = vunpack.c.l.b16 %v325
        %v454 = vunpack.c.l.b16 %v326
        %v455 = vunpack.c.l.b16 %v327
        %v456 = vpack.c.b16 %v441, %v440
        %v457 = vpack.c.b16 %v443, %v442
        %v458 = vpack.c.b16 %v445, %v444
        %v459 = vpack.c.b16 %v447, %v446
        %v460 = vpack.c.b16 %v449, %v448
        %v461 = vpack.c.b16 %v451, %v450
        %v462 = vpack.c.b16 %v453, %v452
        %v463 = vpack.c.b16 %v455, %v454
        %v488 = vunpack.c.l.b16 %v295
        %v489 = vunpack.c.l.b16 %v296
        %v490 = vunpack.c.l.b16 %v297
        %v491 = vunpack.c.l.b16 %v298
        %v492 = vunpack.c.l.b16 %v299
        %v493 = vunpack.c.l.b16 %v300
        %v494 = vunpack.c.l.b16 %v301
        %v495 = vunpack.c.l.b16 %v302
        %v496 = vunpack.c.l.b16 %v303
        %v497 = vunpack.c.l.b16 %v304
        %v498 = vunpack.c.l.b16 %v305
        %v499 = vunpack.c.l.b16 %v306
        %v500 = vunpack.c.l.b16 %v307
        %v501 = vunpack.c.l.b16 %v308
        %v502 = vunpack.c.l.b16 %v309
        %v503 = vunpack.c.l.b16 %v310
        %v504 = vpack.c.b16 %v489, %v488
        %v505 = vpack.c.b16 %v491, %v490
        %v506 = vpack.c.b16 %v493, %v492
        %v507 = vpack.c.b16 %v495, %v494
        %v508 = vpack.c.b16 %v497, %v496
        %v509 = vpack.c.b16 %v499, %v498
        %v510 = vpack.c.b16 %v501, %v500
        %v511 = vpack.c.b16 %v503, %v502
        %520 = vmatprep.subr.bf16.mxu0 0
        %521 = vmatpush1.bf16.msra.mxu0 %v504
        %522 = vmatprep.subr.bf16.mxu0 0
        %523 = vmatpush1.bf16.msra.mxu0 %v505
        %524 = vmatprep.subr.bf16.mxu0 0
        %525 = vmatpush1.bf16.msra.mxu0 %v506
        %526 = vmatprep.subr.bf16.mxu0 0
        %527 = vmatpush1.bf16.msra.mxu0 %v507
        %528 = vmatprep.subr.bf16.mxu0 0
        %529 = vmatpush1.bf16.msra.mxu0 %v508
        %530 = vmatprep.subr.bf16.mxu0 0
        %531 = vmatpush1.bf16.msra.mxu0 %v509
        %532 = vmatprep.subr.bf16.mxu0 0
        %533 = vmatpush1.bf16.msra.mxu0 %v510
        %534 = vmatprep.subr.bf16.mxu0 0
        %535 = vmatpush1.bf16.msra.mxu0 %v511
        %536 = vmatprep.subr.bf16.mxu0 0
        %537 = vmatpush1.bf16.msra.mxu0 0
        %538 = vmatprep.subr.bf16.mxu0 0
        %539 = vmatpush1.bf16.msra.mxu0 0
        %540 = vmatprep.subr.bf16.mxu0 0
        %541 = vmatpush1.bf16.msra.mxu0 0
        %542 = vmatprep.subr.bf16.mxu0 0
        %543 = vmatpush1.bf16.msra.mxu0 0
        %544 = vmatprep.subr.bf16.mxu0 0
        %545 = vmatpush1.bf16.msra.mxu0 0
        %546 = vmatprep.subr.bf16.mxu0 0
        %547 = vmatpush1.bf16.msra.mxu0 0
        %548 = vmatprep.subr.bf16.mxu0 0
        %549 = vmatpush1.bf16.msra.mxu0 0
        %550 = vmatprep.subr.bf16.mxu0 0
        %551 = vmatpush1.bf16.msra.mxu0 0
        %552 = vmatprep.mubr.bf16.mxu0 0
        %553 = vmatmul.mubr.bf16.gmra.mrb[0].mxu0 %v456
        %v554 = vpop.f32.mrb[0].mxu0
        %v555 = vadd.f32 %v347, %v554
        %v556 = vpop.f32.mrb[0].mxu0
        %v557 = vpop.f32.mrb[0].mxu0
        %v558 = vadd.f32 %v352, %v557
        %v559 = vpop.f32.mrb[0].mxu0
        %560 = vmatprep.mubr.bf16.mxu0 0
        %561 = vmatmul.mubr.bf16.gmra.mrb[0].mxu0 %v457
        %v562 = vpop.f32.mrb[0].mxu0
        %v563 = vadd.f32 %v357, %v562
        %v564 = vpop.f32.mrb[0].mxu0
        %v565 = vpop.f32.mrb[0].mxu0
        %v566 = vadd.f32 %v362, %v565
        %v567 = vpop.f32.mrb[0].mxu0
        %568 = vmatprep.mubr.bf16.mxu0 0
        %569 = vmatmul.mubr.bf16.gmra.mrb[0].mxu0 %v458
        %v570 = vpop.f32.mrb[0].mxu0
        %v571 = vadd.f32 %v367, %v570
        %v572 = vpop.f32.mrb[0].mxu0
        %v573 = vpop.f32.mrb[0].mxu0
        %v574 = vadd.f32 %v372, %v573
        %v575 = vpop.f32.mrb[0].mxu0
        %576 = vmatprep.mubr.bf16.mxu0 0
        %577 = vmatmul.mubr.bf16.gmra.mrb[0].mxu0 %v459
        %v578 = vpop.f32.mrb[0].mxu0
        %v579 = vadd.f32 %v377, %v578
        %v580 = vpop.f32.mrb[0].mxu0
        %v581 = vpop.f32.mrb[0].mxu0
        %v582 = vadd.f32 %v382, %v581
        %v583 = vpop.f32.mrb[0].mxu0
        %584 = vmatprep.mubr.bf16.mxu0 0
        %585 = vmatmul.mubr.bf16.gmra.mrb[0].mxu0 %v460
        %v586 = vpop.f32.mrb[0].mxu0
        %v587 = vadd.f32 %v387, %v586
        %v588 = vpop.f32.mrb[0].mxu0
        %v589 = vpop.f32.mrb[0].mxu0
        %v590 = vadd.f32 %v392, %v589
        %v591 = vpop.f32.mrb[0].mxu0
        %592 = vmatprep.mubr.bf16.mxu0 0
        %593 = vmatmul.mubr.bf16.gmra.mrb[0].mxu0 %v461
        %v594 = vpop.f32.mrb[0].mxu0
        %v595 = vadd.f32 %v397, %v594
        %v596 = vpop.f32.mrb[0].mxu0
        %v597 = vpop.f32.mrb[0].mxu0
        %v598 = vadd.f32 %v402, %v597
        %v599 = vpop.f32.mrb[0].mxu0
        %600 = vmatprep.mubr.bf16.mxu0 0
        %601 = vmatmul.mubr.bf16.gmra.mrb[0].mxu0 %v462
        %v602 = vpop.f32.mrb[0].mxu0
        %v603 = vadd.f32 %v407, %v602
        %v604 = vpop.f32.mrb[0].mxu0
        %v605 = vpop.f32.mrb[0].mxu0
        %v606 = vadd.f32 %v412, %v605
        %v607 = vpop.f32.mrb[0].mxu0
        %608 = vmatprep.mubr.bf16.mxu0 0
        %609 = vmatmul.mubr.bf16.gmra.mrb[0].mxu0 %v463
        %v610 = vpop.f32.mrb[0].mxu0
        %v611 = vadd.f32 %v417, %v610
        %v612 = vpop.f32.mrb[0].mxu0
        %v613 = vpop.f32.mrb[0].mxu0
        %v614 = vadd.f32 %v422, %v613
        %v615 = vpop.f32.mrb[0].mxu0
        %616 = vdwg.mxu0
        %v617 = vmul.f32 %v555, %v555
        %v618 = vmul.f32 %v558, %v558
        %v619 = vmul.f32 %v563, %v563
        %v620 = vmul.f32 %v566, %v566
        %v621 = vmul.f32 %v571, %v571
        %v622 = vmul.f32 %v574, %v574
        %v623 = vmul.f32 %v579, %v579
        %v624 = vmul.f32 %v582, %v582
        %v625 = vmul.f32 %v587, %v587
        %v626 = vmul.f32 %v590, %v590
        %v627 = vmul.f32 %v595, %v595
        %v628 = vmul.f32 %v598, %v598
        %v629 = vmul.f32 %v603, %v603
        %v630 = vmul.f32 %v606, %v606
        %v631 = vmul.f32 %v611, %v611
        %v632 = vmul.f32 %v614, %v614
        %vm633 = vcmask 261120
        %v634 = vsel %vm633, %v617, 0.0
        %v635 = vsel %vm633, %v618, 0.0
        %v636 = vadd.f32 %v634, %v635
        %v637 = vsel %vm633, %v619, 0.0
        %v638 = vadd.f32 %v636, %v637
        %v639 = vsel %vm633, %v620, 0.0
        %v640 = vadd.f32 %v638, %v639
        %v641 = vsel %vm633, %v621, 0.0
        %v642 = vadd.f32 %v640, %v641
        %v643 = vsel %vm633, %v622, 0.0
        %v644 = vadd.f32 %v642, %v643
        %v645 = vsel %vm633, %v623, 0.0
        %v646 = vadd.f32 %v644, %v645
        %v647 = vsel %vm633, %v624, 0.0
        %v648 = vadd.f32 %v646, %v647
        %v649 = vsel %vm633, %v625, 0.0
        %v650 = vadd.f32 %v648, %v649
        %v651 = vsel %vm633, %v626, 0.0
        %v652 = vadd.f32 %v650, %v651
        %v653 = vsel %vm633, %v627, 0.0
        %v654 = vadd.f32 %v652, %v653
        %v655 = vsel %vm633, %v628, 0.0
        %v656 = vadd.f32 %v654, %v655
        %v657 = vsel %vm633, %v629, 0.0
        %v658 = vadd.f32 %v656, %v657
        %v659 = vsel %vm633, %v630, 0.0
        %v660 = vadd.f32 %v658, %v659
        %v661 = vsel %vm633, %v631, 0.0
        %v662 = vadd.f32 %v660, %v661
        %v663 = vsel %vm633, %v632, 0.0
        %v664 = vadd.f32 %v662, %v663
        %v665 = vrot.slane %v664, 4
        %v666 = vadd.f32 %v664, %v665
        %v667 = vrot.slane %v666, 2
        %v668 = vadd.f32 %v666, %v667
        %v669 = vrot.slane %v668, 1
        %v670 = vadd.f32 %v668, %v669
        %v671 = vmax.f32 %v670, 1e-24
        %v672 = vrsqrt.pop %v671
        %v673 = vmul.f32 %v555, %v672
        %v674 = vmul.f32 %v558, %v672
        %v675 = vmul.f32 %v563, %v672
        %v676 = vmul.f32 %v566, %v672
        %v677 = vmul.f32 %v571, %v672
        %v678 = vmul.f32 %v574, %v672
        %v679 = vmul.f32 %v579, %v672
        %v680 = vmul.f32 %v582, %v672
        %v681 = vmul.f32 %v587, %v672
        %v682 = vmul.f32 %v590, %v672
        %v683 = vmul.f32 %v595, %v672
        %v684 = vmul.f32 %v598, %v672
        %v685 = vmul.f32 %v603, %v672
        %v686 = vmul.f32 %v606, %v672
        %v687 = vmul.f32 %v611, %v672
        %v688 = vmul.f32 %v614, %v672
        %v689 = vpack.c.bf16 %v674, %v673
        %v690 = vpack.c.bf16 %v676, %v675
        %v691 = vpack.c.bf16 %v678, %v677
        %v692 = vpack.c.bf16 %v680, %v679
        %v693 = vpack.c.bf16 %v682, %v681
        %v694 = vpack.c.bf16 %v684, %v683
        %v695 = vpack.c.bf16 %v686, %v685
        %v696 = vpack.c.bf16 %v688, %v687
        %697 = vst.msk [vmem:[#allocation2] sm:$0xff] %vm633, %v689
        %698 = vst.msk [vmem:[#allocation2 + $0x8] sm:$0xff] %vm633, %v690
        %699 = vst.msk [vmem:[#allocation2 + $0x10] sm:$0xff] %vm633, %v691
        %700 = vst.msk [vmem:[#allocation2 + $0x18] sm:$0xff] %vm633, %v692
        %701 = vst.msk [vmem:[#allocation2 + $0x20] sm:$0xff] %vm633, %v693
        %702 = vst.msk [vmem:[#allocation2 + $0x28] sm:$0xff] %vm633, %v694
        %703 = vst.msk [vmem:[#allocation2 + $0x30] sm:$0xff] %vm633, %v695
        %704 = vst.msk [vmem:[#allocation2 + $0x38] sm:$0xff] %vm633, %v696
        %v706 = vpack.i.b16 %v311, %v311
        %v708 = vlaneseq
        %v709 = vshrl.u32 %v708, 7
        %v710 = vsub.s32 0, %v709
        %v711 = vrot.slane %v706, %v710
        %v713 = vunpack.c.l.b16 %v711
        %v714 = vpack.c.b16 %v713, %v713
        %v716 = vmul.bf16 %v295, %v714
        %v717 = vmul.bf16 %v296, %v714
        %v718 = vmul.bf16 %v297, %v714
        %v719 = vmul.bf16 %v298, %v714
        %v720 = vmul.bf16 %v299, %v714
        %v721 = vmul.bf16 %v300, %v714
        %v722 = vmul.bf16 %v301, %v714
        %v723 = vmul.bf16 %v302, %v714
        %v724 = vmul.bf16 %v303, %v714
        %v725 = vmul.bf16 %v304, %v714
        %v726 = vmul.bf16 %v305, %v714
        %v727 = vmul.bf16 %v306, %v714
        %v728 = vmul.bf16 %v307, %v714
        %v729 = vmul.bf16 %v308, %v714
        %v730 = vmul.bf16 %v309, %v714
        %v731 = vmul.bf16 %v310, %v714
        %v748 = vunpack.c.l.b16 %v716
        %v749 = vunpack.c.l.b16 %v717
        %v750 = vunpack.c.l.b16 %v718
        %v751 = vunpack.c.l.b16 %v719
        %v752 = vunpack.c.l.b16 %v720
        %v753 = vunpack.c.l.b16 %v721
        %v754 = vunpack.c.l.b16 %v722
        %v755 = vunpack.c.l.b16 %v723
        %v756 = vunpack.c.l.b16 %v724
        %v757 = vunpack.c.l.b16 %v725
        %v758 = vunpack.c.l.b16 %v726
        %v759 = vunpack.c.l.b16 %v727
        %v760 = vunpack.c.l.b16 %v728
        %v761 = vunpack.c.l.b16 %v729
        %v762 = vunpack.c.l.b16 %v730
        %v763 = vunpack.c.l.b16 %v731
        %v765 = vunpack.c.l.b16 %v311
        %v766 = vpack.c.b16 %v748, %v748
        %v767 = vpack.c.b16 %v749, %v749
        %v768 = vpack.c.b16 %v750, %v750
        %v769 = vpack.c.b16 %v751, %v751
        %v770 = vpack.c.b16 %v752, %v752
        %v771 = vpack.c.b16 %v753, %v753
        %v772 = vpack.c.b16 %v754, %v754
        %v773 = vpack.c.b16 %v755, %v755
        %v774 = vpack.c.b16 %v756, %v756
        %v775 = vpack.c.b16 %v757, %v757
        %v776 = vpack.c.b16 %v758, %v758
        %v777 = vpack.c.b16 %v759, %v759
        %v778 = vpack.c.b16 %v760, %v760
        %v779 = vpack.c.b16 %v761, %v761
        %v780 = vpack.c.b16 %v762, %v762
        %v781 = vpack.c.b16 %v763, %v763
        %v782 = vpack.c.b16 %v765, %v765
        %vm800 = vcmask 257024
        %801 = vst.msk [vmem:[#allocation3] sm:$0xf] %vm800, %v766
        %802 = vst.msk [vmem:[#allocation3 + $0x4] sm:$0xf] %vm800, %v767
        %803 = vst.msk [vmem:[#allocation3 + $0x8] sm:$0xf] %vm800, %v768
        %804 = vst.msk [vmem:[#allocation3 + $0xc] sm:$0xf] %vm800, %v769
        %805 = vst.msk [vmem:[#allocation3 + $0x10] sm:$0xf] %vm800, %v770
        %806 = vst.msk [vmem:[#allocation3 + $0x14] sm:$0xf] %vm800, %v771
        %807 = vst.msk [vmem:[#allocation3 + $0x18] sm:$0xf] %vm800, %v772
        %808 = vst.msk [vmem:[#allocation3 + $0x1c] sm:$0xf] %vm800, %v773
        %809 = vst.msk [vmem:[#allocation3 + $0x20] sm:$0xf] %vm800, %v774
        %810 = vst.msk [vmem:[#allocation3 + $0x24] sm:$0xf] %vm800, %v775
        %811 = vst.msk [vmem:[#allocation3 + $0x28] sm:$0xf] %vm800, %v776
        %812 = vst.msk [vmem:[#allocation3 + $0x2c] sm:$0xf] %vm800, %v777
        %813 = vst.msk [vmem:[#allocation3 + $0x30] sm:$0xf] %vm800, %v778
        %814 = vst.msk [vmem:[#allocation3 + $0x34] sm:$0xf] %vm800, %v779
        %815 = vst.msk [vmem:[#allocation3 + $0x38] sm:$0xf] %vm800, %v780
        %816 = vst.msk [vmem:[#allocation3 + $0x3c] sm:$0xf] %vm800, %v781
        %vm817 = vcmask 253952
        %vm818 = vsmask.f32 256
        %vm819 = vmand %vm817, %vm818
        %v820 = vld [vmem:[#allocation3 + $0x40] sm:$0x1]
        %v821 = vsel %vm819, %v782, %v820
        %822 = vst [vmem:[#allocation3 + $0x40] sm:$0x1] %v821
      $region44: #{tpu_custom_call.1} parent=39 // pred_fallthru
        _
      %v823 = vld [vmem:[%s273] sm:$0xff]
      %v824 = vld [vmem:[%s273 + $0x8] sm:$0xff]
      %v825 = vld [vmem:[%s273 + $0x10] sm:$0xff]
      %v826 = vld [vmem:[%s273 + $0x18] sm:$0xff]
      %v827 = vld [vmem:[%s273 + $0x20] sm:$0xff]
      %v828 = vld [vmem:[%s273 + $0x28] sm:$0xff]
      %v829 = vld [vmem:[%s273 + $0x30] sm:$0xff]
      %v830 = vld [vmem:[%s273 + $0x38] sm:$0xff]
      %v831 = vld [vmem:[%s273 + $0x40] sm:$0xff]
      %v832 = vld [vmem:[%s273 + $0x48] sm:$0xff]
      %v833 = vld [vmem:[%s273 + $0x50] sm:$0xff]
      %v834 = vld [vmem:[%s273 + $0x58] sm:$0xff]
      %v835 = vld [vmem:[%s273 + $0x60] sm:$0xff]
      %v836 = vld [vmem:[%s273 + $0x68] sm:$0xff]
      %v837 = vld [vmem:[%s273 + $0x70] sm:$0xff]
      %v838 = vld [vmem:[%s273 + $0x78] sm:$0xff]
      %v839 = vld [vmem:[%s3] sm:$0xf]
      %v840 = vld [vmem:[%s3 + $0x4] sm:$0xf]
      %v841 = vld [vmem:[%s3 + $0x8] sm:$0xf]
      %v842 = vld [vmem:[%s3 + $0xc] sm:$0xf]
      %v843 = vld [vmem:[%s3 + $0x10] sm:$0xf]
      %v844 = vld [vmem:[%s3 + $0x14] sm:$0xf]
      %v845 = vld [vmem:[%s3 + $0x18] sm:$0xf]
      %v846 = vld [vmem:[%s3 + $0x1c] sm:$0xf]
      %v847 = vld [vmem:[%s3 + $0x20] sm:$0xf]
      %v848 = vld [vmem:[%s3 + $0x24] sm:$0xf]
      %v849 = vld [vmem:[%s3 + $0x28] sm:$0xf]
      %v850 = vld [vmem:[%s3 + $0x2c] sm:$0xf]
      %v851 = vld [vmem:[%s3 + $0x30] sm:$0xf]
      %v852 = vld [vmem:[%s3 + $0x34] sm:$0xf]
      %v853 = vld [vmem:[%s3 + $0x38] sm:$0xf]
      %v854 = vld [vmem:[%s3 + $0x3c] sm:$0xf]
      %v855 = vpack.c.bf16 %v824, %v823
      %v856 = vpack.c.bf16 %v826, %v825
      %v857 = vpack.c.bf16 %v828, %v827
      %v858 = vpack.c.bf16 %v830, %v829
      %v859 = vpack.c.bf16 %v832, %v831
      %v860 = vpack.c.bf16 %v834, %v833
      %v861 = vpack.c.bf16 %v836, %v835
      %v862 = vpack.c.bf16 %v838, %v837
      %v863 = vld [vmem:[%s4] sm:$0xff]
      %v864 = vld [vmem:[%s4 + $0x8] sm:$0xff]
      %v865 = vld [vmem:[%s4 + $0x10] sm:$0xff]
      %v866 = vld [vmem:[%s4 + $0x18] sm:$0xff]
      %v867 = vld [vmem:[%s4 + $0x20] sm:$0xff]
      %v868 = vld [vmem:[%s4 + $0x28] sm:$0xff]
      %v869 = vld [vmem:[%s4 + $0x30] sm:$0xff]
      %v870 = vld [vmem:[%s4 + $0x38] sm:$0xff]
      %v871 = vld [vmem:[%s4 + $0x40] sm:$0xff]
      %v872 = vld [vmem:[%s4 + $0x48] sm:$0xff]
      %v873 = vld [vmem:[%s4 + $0x50] sm:$0xff]
      %v874 = vld [vmem:[%s4 + $0x58] sm:$0xff]
      %v875 = vld [vmem:[%s4 + $0x60] sm:$0xff]
      %v876 = vld [vmem:[%s4 + $0x68] sm:$0xff]
      %v877 = vld [vmem:[%s4 + $0x70] sm:$0xff]
      %v878 = vld [vmem:[%s4 + $0x78] sm:$0xff]
      %880 = vset.pattern.permute.xlu0 0
      %881 = vperm.xlu0 %880, %v863
      %v882 = vpop.permute.xlu0 %881
      %885 = vset.pattern.permute.xlu0 0
      %886 = vperm.xlu0 %885, %v864
      %v887 = vpop.permute.xlu0 %886
      %890 = vset.pattern.permute.xlu0 0
      %891 = vperm.xlu0 %890, %v865
      %v892 = vpop.permute.xlu0 %891
      %895 = vset.pattern.permute.xlu0 0
      %896 = vperm.xlu0 %895, %v866
      %v897 = vpop.permute.xlu0 %896
      %900 = vset.pattern.permute.xlu0 0
      %901 = vperm.xlu0 %900, %v867
      %v902 = vpop.permute.xlu0 %901
      %905 = vset.pattern.permute.xlu0 0
      %906 = vperm.xlu0 %905, %v868
      %v907 = vpop.permute.xlu0 %906
      %910 = vset.pattern.permute.xlu0 0
      %911 = vperm.xlu0 %910, %v869
      %v912 = vpop.permute.xlu0 %911
      %915 = vset.pattern.permute.xlu0 0
      %916 = vperm.xlu0 %915, %v870
      %v917 = vpop.permute.xlu0 %916
      %920 = vset.pattern.permute.xlu0 0
      %921 = vperm.xlu0 %920, %v871
      %v922 = vpop.permute.xlu0 %921
      %925 = vset.pattern.permute.xlu0 0
      %926 = vperm.xlu0 %925, %v872
      %v927 = vpop.permute.xlu0 %926
      %930 = vset.pattern.permute.xlu0 0
      %931 = vperm.xlu0 %930, %v873
      %v932 = vpop.permute.xlu0 %931
      %935 = vset.pattern.permute.xlu0 0
      %936 = vperm.xlu0 %935, %v874
      %v937 = vpop.permute.xlu0 %936
      %940 = vset.pattern.permute.xlu0 0
      %941 = vperm.xlu0 %940, %v875
      %v942 = vpop.permute.xlu0 %941
      %945 = vset.pattern.permute.xlu0 0
      %946 = vperm.xlu0 %945, %v876
      %v947 = vpop.permute.xlu0 %946
      %950 = vset.pattern.permute.xlu0 0
      %951 = vperm.xlu0 %950, %v877
      %v952 = vpop.permute.xlu0 %951
      %955 = vset.pattern.permute.xlu0 0
      %956 = vperm.xlu0 %955, %v878
      %v957 = vpop.permute.xlu0 %956
      %v975 = vunpack.c.l.b16 %v839
      %v976 = vunpack.c.l.b16 %v840
      %v977 = vunpack.c.l.b16 %v841
      %v978 = vunpack.c.l.b16 %v842
      %v979 = vunpack.c.l.b16 %v843
      %v980 = vunpack.c.l.b16 %v844
      %v981 = vunpack.c.l.b16 %v845
      %v982 = vunpack.c.l.b16 %v846
      %v983 = vunpack.c.l.b16 %v847
      %v984 = vunpack.c.l.b16 %v848
      %v985 = vunpack.c.l.b16 %v849
      %v986 = vunpack.c.l.b16 %v850
      %v987 = vunpack.c.l.b16 %v851
      %v988 = vunpack.c.l.b16 %v852
      %v989 = vunpack.c.l.b16 %v853
      %v990 = vunpack.c.l.b16 %v854
      %v991 = vpack.c.b16 %v976, %v975
      %v992 = vpack.c.b16 %v978, %v977
      %v993 = vpack.c.b16 %v980, %v979
      %v994 = vpack.c.b16 %v982, %v981
      %v995 = vpack.c.b16 %v984, %v983
      %v996 = vpack.c.b16 %v986, %v985
      %v997 = vpack.c.b16 %v988, %v987
      %v998 = vpack.c.b16 %v990, %v989
      %1007 = vmatprep.subr.bf16.mxu0 0
      %1008 = vmatpush1.bf16.msra.mxu0 %v855
      %1009 = vmatprep.subr.bf16.mxu0 0
      %1010 = vmatpush1.bf16.msra.mxu0 %v856
      %1011 = vmatprep.subr.bf16.mxu0 0
      %1012 = vmatpush1.bf16.msra.mxu0 %v857
      %1013 = vmatprep.subr.bf16.mxu0 0
      %1014 = vmatpush1.bf16.msra.mxu0 %v858
      %1015 = vmatprep.subr.bf16.mxu0 0
      %1016 = vmatpush1.bf16.msra.mxu0 %v859
      %1017 = vmatprep.subr.bf16.mxu0 0
      %1018 = vmatpush1.bf16.msra.mxu0 %v860
      %1019 = vmatprep.subr.bf16.mxu0 0
      %1020 = vmatpush1.bf16.msra.mxu0 %v861
      %1021 = vmatprep.subr.bf16.mxu0 0
      %1022 = vmatpush1.bf16.msra.mxu0 %v862
      %1023 = vmatprep.subr.bf16.mxu0 0
      %1024 = vmatpush1.bf16.msra.mxu0 0
      %1025 = vmatprep.subr.bf16.mxu0 0
      %1026 = vmatpush1.bf16.msra.mxu0 0
      %1027 = vmatprep.subr.bf16.mxu0 0
      %1028 = vmatpush1.bf16.msra.mxu0 0
      %1029 = vmatprep.subr.bf16.mxu0 0
      %1030 = vmatpush1.bf16.msra.mxu0 0
      %1031 = vmatprep.subr.bf16.mxu0 0
      %1032 = vmatpush1.bf16.msra.mxu0 0
      %1033 = vmatprep.subr.bf16.mxu0 0
      %1034 = vmatpush1.bf16.msra.mxu0 0
      %1035 = vmatprep.subr.bf16.mxu0 0
      %1036 = vmatpush1.bf16.msra.mxu0 0
      %1037 = vmatprep.subr.bf16.mxu0 0
      %1038 = vmatpush1.bf16.msra.mxu0 0
      %1039 = vmatprep.mubr.bf16.mxu0 0
      %1040 = vmatmul.mubr.bf16.gmra.mrb[0].mxu0 %v991
      %v1041 = vpop.f32.mrb[0].mxu0
      %v1042 = vadd.f32 %v882, %v1041
      %v1043 = vpop.f32.mrb[0].mxu0
      %v1044 = vpop.f32.mrb[0].mxu0
      %v1045 = vadd.f32 %v887, %v1044
      %v1046 = vpop.f32.mrb[0].mxu0
      %1047 = vmatprep.mubr.bf16.mxu0 0
      %1048 = vmatmul.mubr.bf16.gmra.mrb[0].mxu0 %v992
      %v1049 = vpop.f32.mrb[0].mxu0
      %v1050 = vadd.f32 %v892, %v1049
      %v1051 = vpop.f32.mrb[0].mxu0
      %v1052 = vpop.f32.mrb[0].mxu0
      %v1053 = vadd.f32 %v897, %v1052
      %v1054 = vpop.f32.mrb[0].mxu0
      %1055 = vmatprep.mubr.bf16.mxu0 0
      %1056 = vmatmul.mubr.bf16.gmra.mrb[0].mxu0 %v993
      %v1057 = vpop.f32.mrb[0].mxu0
      %v1058 = vadd.f32 %v902, %v1057
      %v1059 = vpop.f32.mrb[0].mxu0
      %v1060 = vpop.f32.mrb[0].mxu0
      %v1061 = vadd.f32 %v907, %v1060
      %v1062 = vpop.f32.mrb[0].mxu0
      %1063 = vmatprep.mubr.bf16.mxu0 0
      %1064 = vmatmul.mubr.bf16.gmra.mrb[0].mxu0 %v994
      %v1065 = vpop.f32.mrb[0].mxu0
      %v1066 = vadd.f32 %v912, %v1065
      %v1067 = vpop.f32.mrb[0].mxu0
      %v1068 = vpop.f32.mrb[0].mxu0
      %v1069 = vadd.f32 %v917, %v1068
      %v1070 = vpop.f32.mrb[0].mxu0
      %1071 = vmatprep.mubr.bf16.mxu0 0
      %1072 = vmatmul.mubr.bf16.gmra.mrb[0].mxu0 %v995
      %v1073 = vpop.f32.mrb[0].mxu0
      %v1074 = vadd.f32 %v922, %v1073
      %v1075 = vpop.f32.mrb[0].mxu0
      %v1076 = vpop.f32.mrb[0].mxu0
      %v1077 = vadd.f32 %v927, %v1076
      %v1078 = vpop.f32.mrb[0].mxu0
      %1079 = vmatprep.mubr.bf16.mxu0 0
      %1080 = vmatmul.mubr.bf16.gmra.mrb[0].mxu0 %v996
      %v1081 = vpop.f32.mrb[0].mxu0
      %v1082 = vadd.f32 %v932, %v1081
      %v1083 = vpop.f32.mrb[0].mxu0
      %v1084 = vpop.f32.mrb[0].mxu0
      %v1085 = vadd.f32 %v937, %v1084
      %v1086 = vpop.f32.mrb[0].mxu0
      %1087 = vmatprep.mubr.bf16.mxu0 0
      %1088 = vmatmul.mubr.bf16.gmra.mrb[0].mxu0 %v997
      %v1089 = vpop.f32.mrb[0].mxu0
      %v1090 = vadd.f32 %v942, %v1089
      %v1091 = vpop.f32.mrb[0].mxu0
      %v1092 = vpop.f32.mrb[0].mxu0
      %v1093 = vadd.f32 %v947, %v1092
      %v1094 = vpop.f32.mrb[0].mxu0
      %1095 = vmatprep.mubr.bf16.mxu0 0
      %1096 = vmatmul.mubr.bf16.gmra.mrb[0].mxu0 %v998
      %v1097 = vpop.f32.mrb[0].mxu0
      %v1098 = vadd.f32 %v952, %v1097
      %v1099 = vpop.f32.mrb[0].mxu0
      %v1100 = vpop.f32.mrb[0].mxu0
      %v1101 = vadd.f32 %v957, %v1100
      %v1102 = vpop.f32.mrb[0].mxu0
      %1103 = vdwg.mxu0
      %v1104 = vmul.f32 %v1042, %v1042
      %v1105 = vmul.f32 %v1045, %v1045
      %v1106 = vmul.f32 %v1050, %v1050
      %v1107 = vmul.f32 %v1053, %v1053
      %v1108 = vmul.f32 %v1058, %v1058
      %v1109 = vmul.f32 %v1061, %v1061
      %v1110 = vmul.f32 %v1066, %v1066
      %v1111 = vmul.f32 %v1069, %v1069
      %v1112 = vmul.f32 %v1074, %v1074
      %v1113 = vmul.f32 %v1077, %v1077
      %v1114 = vmul.f32 %v1082, %v1082
      %v1115 = vmul.f32 %v1085, %v1085
      %v1116 = vmul.f32 %v1090, %v1090
      %v1117 = vmul.f32 %v1093, %v1093
      %v1118 = vmul.f32 %v1098, %v1098
      %v1119 = vmul.f32 %v1101, %v1101
      %vm1120 = vcmask 261120
      %v1121 = vsel %vm1120, %v1104, 0.0
      %v1122 = vsel %vm1120, %v1105, 0.0
      %v1123 = vadd.f32 %v1121, %v1122
      %v1124 = vsel %vm1120, %v1106, 0.0
      %v1125 = vadd.f32 %v1123, %v1124
      %v1126 = vsel %vm1120, %v1107, 0.0
      %v1127 = vadd.f32 %v1125, %v1126
      %v1128 = vsel %vm1120, %v1108, 0.0
      %v1129 = vadd.f32 %v1127, %v1128
      %v1130 = vsel %vm1120, %v1109, 0.0
      %v1131 = vadd.f32 %v1129, %v1130
      %v1132 = vsel %vm1120, %v1110, 0.0
      %v1133 = vadd.f32 %v1131, %v1132
      %v1134 = vsel %vm1120, %v1111, 0.0
      %v1135 = vadd.f32 %v1133, %v1134
      %v1136 = vsel %vm1120, %v1112, 0.0
      %v1137 = vadd.f32 %v1135, %v1136
      %v1138 = vsel %vm1120, %v1113, 0.0
      %v1139 = vadd.f32 %v1137, %v1138
      %v1140 = vsel %vm1120, %v1114, 0.0
      %v1141 = vadd.f32 %v1139, %v1140
      %v1142 = vsel %vm1120, %v1115, 0.0
      %v1143 = vadd.f32 %v1141, %v1142
      %v1144 = vsel %vm1120, %v1116, 0.0
      %v1145 = vadd.f32 %v1143, %v1144
      %v1146 = vsel %vm1120, %v1117, 0.0
      %v1147 = vadd.f32 %v1145, %v1146
      %v1148 = vsel %vm1120, %v1118, 0.0
      %v1149 = vadd.f32 %v1147, %v1148
      %v1150 = vsel %vm1120, %v1119, 0.0
      %v1151 = vadd.f32 %v1149, %v1150
      %v1152 = vrot.slane %v1151, 4
      %v1153 = vadd.f32 %v1151, %v1152
      %v1154 = vrot.slane %v1153, 2
      %v1155 = vadd.f32 %v1153, %v1154
      %v1156 = vrot.slane %v1155, 1
      %v1157 = vadd.f32 %v1155, %v1156
      %v1158 = vmax.f32 %v1157, 1e-24
      %v1159 = vrsqrt.pop %v1158
      %v1160 = vmul.f32 %v1159, 30.0
      %v1161 = vmul.f32 %v1042, %v1160
      %v1162 = vmul.f32 %v1045, %v1160
      %v1163 = vmul.f32 %v1050, %v1160
      %v1164 = vmul.f32 %v1053, %v1160
      %v1165 = vmul.f32 %v1058, %v1160
      %v1166 = vmul.f32 %v1061, %v1160
      %v1167 = vmul.f32 %v1066, %v1160
      %v1168 = vmul.f32 %v1069, %v1160
      %v1169 = vmul.f32 %v1074, %v1160
      %v1170 = vmul.f32 %v1077, %v1160
      %v1171 = vmul.f32 %v1082, %v1160
      %v1172 = vmul.f32 %v1085, %v1160
      %v1173 = vmul.f32 %v1090, %v1160
      %v1174 = vmul.f32 %v1093, %v1160
      %v1175 = vmul.f32 %v1098, %v1160
      %v1176 = vmul.f32 %v1101, %v1160
      %v1177 = vpack.c.bf16 %v1162, %v1161
      %v1178 = vpack.c.bf16 %v1164, %v1163
      %v1179 = vpack.c.bf16 %v1166, %v1165
      %v1180 = vpack.c.bf16 %v1168, %v1167
      %v1181 = vpack.c.bf16 %v1170, %v1169
      %v1182 = vpack.c.bf16 %v1172, %v1171
      %v1183 = vpack.c.bf16 %v1174, %v1173
      %v1184 = vpack.c.bf16 %v1176, %v1175
      %v1185 = vld [vmem:[#allocation2] sm:$0xff]
      %v1186 = vld [vmem:[#allocation2 + $0x8] sm:$0xff]
      %v1187 = vld [vmem:[#allocation2 + $0x10] sm:$0xff]
      %v1188 = vld [vmem:[#allocation2 + $0x18] sm:$0xff]
      %v1189 = vld [vmem:[#allocation2 + $0x20] sm:$0xff]
      %v1190 = vld [vmem:[#allocation2 + $0x28] sm:$0xff]
      %v1191 = vld [vmem:[#allocation2 + $0x30] sm:$0xff]
      %v1192 = vld [vmem:[#allocation2 + $0x38] sm:$0xff]
      %1193 = vxpose.xlu0.c.b16.start [1/8] %v1177, 128
      %1194 = vxpose.xlu0.c.b16.cont [2/8] %v1178, 128
      %1195 = vxpose.xlu0.c.b16.cont [3/8] %v1179, 128
      %1196 = vxpose.xlu0.c.b16.cont [4/8] %v1180, 128
      %1197 = vxpose.xlu0.c.b16.cont [5/8] %v1181, 128
      %1198 = vxpose.xlu0.c.b16.cont [6/8] %v1182, 128
      %1199 = vxpose.xlu0.c.b16.cont [7/8] %v1183, 128
      %1200 = vxpose.xlu0.c.b16.end [8/8] %v1184, 128
      %v1201 = vpop.trf.xlu0
      %v1202 = vpop.trf.xlu0
      %v1203 = vpop.trf.xlu0
      %v1204 = vpop.trf.xlu0
      %v1205 = vpop.trf.xlu0
      %v1206 = vpop.trf.xlu0
      %v1207 = vpop.trf.xlu0
      %v1208 = vpop.trf.xlu0
      %1209 = vmatprep.subr.bf16.mxu0 0
      %1210 = vmatpush1.bf16.msra.mxu0 %v1185
      %1211 = vmatprep.subr.bf16.mxu0 0
      %1212 = vmatpush1.bf16.msra.mxu0 %v1186
      %1213 = vmatprep.subr.bf16.mxu0 0
      %1214 = vmatpush1.bf16.msra.mxu0 %v1187
      %1215 = vmatprep.subr.bf16.mxu0 0
      %1216 = vmatpush1.bf16.msra.mxu0 %v1188
      %1217 = vmatprep.subr.bf16.mxu0 0
      %1218 = vmatpush1.bf16.msra.mxu0 %v1189
      %1219 = vmatprep.subr.bf16.mxu0 0
      %1220 = vmatpush1.bf16.msra.mxu0 %v1190
      %1221 = vmatprep.subr.bf16.mxu0 0
      %1222 = vmatpush1.bf16.msra.mxu0 %v1191
      %1223 = vmatprep.subr.bf16.mxu0 0
      %1224 = vmatpush1.bf16.msra.mxu0 %v1192
      %1225 = vmatprep.subr.bf16.mxu0 0
      %1226 = vmatpush1.bf16.msra.mxu0 0
      %1227 = vmatprep.subr.bf16.mxu0 0
      %1228 = vmatpush1.bf16.msra.mxu0 0
      %1229 = vmatprep.subr.bf16.mxu0 0
      %1230 = vmatpush1.bf16.msra.mxu0 0
      %1231 = vmatprep.subr.bf16.mxu0 0
      %1232 = vmatpush1.bf16.msra.mxu0 0
      %1233 = vmatprep.subr.bf16.mxu0 0
      %1234 = vmatpush1.bf16.msra.mxu0 0
      %1235 = vmatprep.subr.bf16.mxu0 0
      %1236 = vmatpush1.bf16.msra.mxu0 0
      %1237 = vmatprep.subr.bf16.mxu0 0
      %1238 = vmatpush1.bf16.msra.mxu0 0
      %1239 = vmatprep.subr.bf16.mxu0 0
      %1240 = vmatpush1.bf16.msra.mxu0 0
      %1241 = vmatprep.mubr.bf16.mxu0 0
      %1242 = vmatmul.mubr.bf16.gmra.mrb[0].mxu0 %v1201
      %v1243 = vpop.f32.mrb[0].mxu0
      %v1244 = vadd.f32 0.0, %v1243
      %v1245 = vpop.f32.mrb[0].mxu0
      %v1246 = vpop.f32.mrb[0].mxu0
      %v1247 = vadd.f32 0.0, %v1246
      %v1248 = vpop.f32.mrb[0].mxu0
      %1249 = vmatprep.mubr.bf16.mxu0 0
      %1250 = vmatmul.mubr.bf16.gmra.mrb[0].mxu0 %v1202
      %v1251 = vpop.f32.mrb[0].mxu0
      %v1252 = vadd.f32 0.0, %v1251
      %v1253 = vpop.f32.mrb[0].mxu0
      %v1254 = vpop.f32.mrb[0].mxu0
      %v1255 = vadd.f32 0.0, %v1254
      %v1256 = vpop.f32.mrb[0].mxu0
      %1257 = vdwg.mxu0
      %v1258 = vsel %vm1120, %v1244, -inf
      %1259 = vmax.xlane.f32.xlu0 %v1258
      %v1260 = vpop.xlane.xlu0 %1259
      %v1261 = vsel %vm1120, %v1247, -inf
      %1262 = vmax.xlane.f32.xlu0 %v1261
      %v1263 = vpop.xlane.xlu0 %1262
      %v1264 = vsel %vm1120, %v1252, -inf
      %1265 = vmax.xlane.f32.xlu0 %v1264
      %v1266 = vpop.xlane.xlu0 %1265
      %v1267 = vsel %vm1120, %v1255, -inf
      %1268 = vmax.xlane.f32.xlu0 %v1267
      %v1269 = vpop.xlane.xlu0 %1268
      %v1270 = vsub.f32 %v1244, %v1260
      %v1271 = vsub.f32 %v1247, %v1263
      %v1272 = vsub.f32 %v1252, %v1266
      %v1273 = vsub.f32 %v1255, %v1269
      %v1274 = vpack.c.bf16 %v1271, %v1270
      %v1275 = vpack.c.bf16 %v1273, %v1272
      %v1277 = vmul.bf16 %v1274, 1069105081
      %v1278 = vpow.bf16.pop %v1277
      %v1280 = vmul.bf16 %v1275, 1069105081
      %v1281 = vpow.bf16.pop %v1280
      %v1282 = vunpack.c.l.bf16 %v1278
      %v1283 = vunpack.c.h.bf16 %v1278
      %v1284 = vunpack.c.l.bf16 %v1281
      %v1285 = vunpack.c.h.bf16 %v1281
      %v1286 = vsel %vm1120, %v1282, 0.0
      %1287 = vadd.xlane.f32.xlu0 %v1286
      %v1288 = vpop.xlane.xlu0 %1287
      %v1289 = vsel %vm1120, %v1283, 0.0
      %1290 = vadd.xlane.f32.xlu0 %v1289
      %v1291 = vpop.xlane.xlu0 %1290
      %v1292 = vsel %vm1120, %v1284, 0.0
      %1293 = vadd.xlane.f32.xlu0 %v1292
      %v1294 = vpop.xlane.xlu0 %1293
      %v1295 = vsel %vm1120, %v1285, 0.0
      %1296 = vadd.xlane.f32.xlu0 %v1295
      %v1297 = vpop.xlane.xlu0 %1296
      %v1298 = vrcp.pop %v1288
      %v1299 = vrcp.pop %v1291
      %v1300 = vrcp.pop %v1294
      %v1301 = vrcp.pop %v1297
      %v1302 = vpack.c.bf16 %v1299, %v1298
      %v1303 = vpack.c.bf16 %v1301, %v1300
      %v1304 = vmul.bf16 %v1278, %v1302
      %v1305 = vmul.bf16 %v1281, %v1303
      %v1306 = vld [vmem:[#allocation3] sm:$0xf]
      %v1307 = vld [vmem:[#allocation3 + $0x4] sm:$0xf]
      %v1308 = vld [vmem:[#allocation3 + $0x8] sm:$0xf]
      %v1309 = vld [vmem:[#allocation3 + $0xc] sm:$0xf]
      %v1310 = vld [vmem:[#allocation3 + $0x10] sm:$0xf]
      %v1311 = vld [vmem:[#allocation3 + $0x14] sm:$0xf]
      %v1312 = vld [vmem:[#allocation3 + $0x18] sm:$0xf]
      %v1313 = vld [vmem:[#allocation3 + $0x1c] sm:$0xf]
      %v1314 = vld [vmem:[#allocation3 + $0x20] sm:$0xf]
      %v1315 = vld [vmem:[#allocation3 + $0x24] sm:$0xf]
      %v1316 = vld [vmem:[#allocation3 + $0x28] sm:$0xf]
      %v1317 = vld [vmem:[#allocation3 + $0x2c] sm:$0xf]
      %v1318 = vld [vmem:[#allocation3 + $0x30] sm:$0xf]
      %v1319 = vld [vmem:[#allocation3 + $0x34] sm:$0xf]
      %v1320 = vld [vmem:[#allocation3 + $0x38] sm:$0xf]
      %v1321 = vld [vmem:[#allocation3 + $0x3c] sm:$0xf]
      %v1322 = vld [vmem:[#allocation3 + $0x40] sm:$0x1]
      %v1340 = vunpack.c.l.b16 %v1306
      %v1341 = vunpack.c.l.b16 %v1307
      %v1342 = vunpack.c.l.b16 %v1308
      %v1343 = vunpack.c.l.b16 %v1309
      %v1344 = vunpack.c.l.b16 %v1310
      %v1345 = vunpack.c.l.b16 %v1311
      %v1346 = vunpack.c.l.b16 %v1312
      %v1347 = vunpack.c.l.b16 %v1313
      %v1348 = vunpack.c.l.b16 %v1314
      %v1349 = vunpack.c.l.b16 %v1315
      %v1350 = vunpack.c.l.b16 %v1316
      %v1351 = vunpack.c.l.b16 %v1317
      %v1352 = vunpack.c.l.b16 %v1318
      %v1353 = vunpack.c.l.b16 %v1319
      %v1354 = vunpack.c.l.b16 %v1320
      %v1355 = vunpack.c.l.b16 %v1321
      %v1356 = vunpack.c.l.b16 %v1322
      %v1357 = vpack.c.b16 %v1341, %v1340
      %v1358 = vpack.c.b16 %v1343, %v1342
      %v1359 = vpack.c.b16 %v1345, %v1344
      %v1360 = vpack.c.b16 %v1347, %v1346
      %v1361 = vpack.c.b16 %v1349, %v1348
      %v1362 = vpack.c.b16 %v1351, %v1350
      %v1363 = vpack.c.b16 %v1353, %v1352
      %v1364 = vpack.c.b16 %v1355, %v1354
      %v1365 = vpack.c.b16 %v1356, %v1356
      %v1367 = vsel %vm1120, %v1357, 0
      %v1370 = vsel %vm1120, %v1358, 0
      %v1373 = vsel %vm1120, %v1359, 0
      %v1376 = vsel %vm1120, %v1360, 0
      %v1379 = vsel %vm1120, %v1361, 0
      %v1382 = vsel %vm1120, %v1362, 0
      %v1385 = vsel %vm1120, %v1363, 0
      %v1388 = vsel %vm1120, %v1364, 0
      %v1391 = vsel %vm1120, %v1365, 0
      %v1394 = vsel %vm1120, %v1304, 0
      %v1397 = vsel %vm1120, %v1305, 0
      %1399 = vmatprep.subr.bf16.mxu0 0
      %1400 = vmatpush1.bf16.xpose.msra.mxu0 %v1394
      %1401 = vmatprep.subr.bf16.mxu0 0
      %1402 = vmatpush1.bf16.xpose.msra.mxu0 %v1397
      %1403 = vmatprep.subr.bf16.mxu0 0
      %1404 = vmatpush1.bf16.xpose.msra.mxu0 0
      %1405 = vmatprep.subr.bf16.mxu0 0
      %1406 = vmatpush1.bf16.xpose.msra.mxu0 0
      %1407 = vmatprep.subr.bf16.mxu0 0
      %1408 = vmatpush1.bf16.xpose.msra.mxu0 0
      %1409 = vmatprep.subr.bf16.mxu0 0
      %1410 = vmatpush1.bf16.xpose.msra.mxu0 0
      %1411 = vmatprep.subr.bf16.mxu0 0
      %1412 = vmatpush1.bf16.xpose.msra.mxu0 0
      %1413 = vmatprep.subr.bf16.mxu0 0
      %1414 = vmatpush1.bf16.xpose.msra.mxu0 0
      %1415 = vmatprep.subr.bf16.mxu0 0
      %1416 = vmatpush1.bf16.xpose.msra.mxu0 0
      %1417 = vmatprep.subr.bf16.mxu0 0
      %1418 = vmatpush1.bf16.xpose.msra.mxu0 0
      %1419 = vmatprep.subr.bf16.mxu0 0
      %1420 = vmatpush1.bf16.xpose.msra.mxu0 0
      %1421 = vmatprep.subr.bf16.mxu0 0
      %1422 = vmatpush1.bf16.xpose.msra.mxu0 0
      %1423 = vmatprep.subr.bf16.mxu0 0
      %1424 = vmatpush1.bf16.xpose.msra.mxu0 0
      %1425 = vmatprep.subr.bf16.mxu0 0
      %1426 = vmatpush1.bf16.xpose.msra.mxu0 0
      %1427 = vmatprep.subr.bf16.mxu0 0
      %1428 = vmatpush1.bf16.xpose.msra.mxu0 0
      %1429 = vmatprep.subr.bf16.mxu0 0
      %1430 = vmatpush1.bf16.xpose.msra.mxu0 0
      %1431 = vmatprep.mubr.bf16.mxu0 0
      %1432 = vmatmul.mubr.bf16.gmra.mrb[0].mxu0 %v1367
      %v1433 = vpop.f32.mrb[0].mxu0
      %v1434 = vadd.f32 0.0, %v1433
      %v1435 = vpop.f32.mrb[0].mxu0
      %v1436 = vpop.f32.mrb[0].mxu0
      %v1437 = vadd.f32 0.0, %v1436
      %v1438 = vpop.f32.mrb[0].mxu0
      %1439 = vmatprep.mubr.bf16.mxu0 0
      %1440 = vmatmul.mubr.bf16.gmra.mrb[0].mxu0 %v1370
      %v1441 = vpop.f32.mrb[0].mxu0
      %v1442 = vadd.f32 0.0, %v1441
      %v1443 = vpop.f32.mrb[0].mxu0
      %v1444 = vpop.f32.mrb[0].mxu0
      %v1445 = vadd.f32 0.0, %v1444
      %v1446 = vpop.f32.mrb[0].mxu0
      %1447 = vmatprep.mubr.bf16.mxu0 0
      %1448 = vmatmul.mubr.bf16.gmra.mrb[0].mxu0 %v1373
      %v1449 = vpop.f32.mrb[0].mxu0
      %v1450 = vadd.f32 0.0, %v1449
      %v1451 = vpop.f32.mrb[0].mxu0
      %v1452 = vpop.f32.mrb[0].mxu0
      %v1453 = vadd.f32 0.0, %v1452
      %v1454 = vpop.f32.mrb[0].mxu0
      %1455 = vmatprep.mubr.bf16.mxu0 0
      %1456 = vmatmul.mubr.bf16.gmra.mrb[0].mxu0 %v1376
      %v1457 = vpop.f32.mrb[0].mxu0
      %v1458 = vadd.f32 0.0, %v1457
      %v1459 = vpop.f32.mrb[0].mxu0
      %v1460 = vpop.f32.mrb[0].mxu0
      %v1461 = vadd.f32 0.0, %v1460
      %v1462 = vpop.f32.mrb[0].mxu0
      %1463 = vmatprep.mubr.bf16.mxu0 0
      %1464 = vmatmul.mubr.bf16.gmra.mrb[0].mxu0 %v1379
      %v1465 = vpop.f32.mrb[0].mxu0
      %v1466 = vadd.f32 0.0, %v1465
      %v1467 = vpop.f32.mrb[0].mxu0
      %v1468 = vpop.f32.mrb[0].mxu0
      %v1469 = vadd.f32 0.0, %v1468
      %v1470 = vpop.f32.mrb[0].mxu0
      %1471 = vmatprep.mubr.bf16.mxu0 0
      %1472 = vmatmul.mubr.bf16.gmra.mrb[0].mxu0 %v1382
      %v1473 = vpop.f32.mrb[0].mxu0
      %v1474 = vadd.f32 0.0, %v1473
      %v1475 = vpop.f32.mrb[0].mxu0
      %v1476 = vpop.f32.mrb[0].mxu0
      %v1477 = vadd.f32 0.0, %v1476
      %v1478 = vpop.f32.mrb[0].mxu0
      %1479 = vmatprep.mubr.bf16.mxu0 0
      %1480 = vmatmul.mubr.bf16.gmra.mrb[0].mxu0 %v1385
      %v1481 = vpop.f32.mrb[0].mxu0
      %v1482 = vadd.f32 0.0, %v1481
      %v1483 = vpop.f32.mrb[0].mxu0
      %v1484 = vpop.f32.mrb[0].mxu0
      %v1485 = vadd.f32 0.0, %v1484
      %v1486 = vpop.f32.mrb[0].mxu0
      %1487 = vmatprep.mubr.bf16.mxu0 0
      %1488 = vmatmul.mubr.bf16.gmra.mrb[0].mxu0 %v1388
      %v1489 = vpop.f32.mrb[0].mxu0
      %v1490 = vadd.f32 0.0, %v1489
      %v1491 = vpop.f32.mrb[0].mxu0
      %v1492 = vpop.f32.mrb[0].mxu0
      %v1493 = vadd.f32 0.0, %v1492
      %v1494 = vpop.f32.mrb[0].mxu0
      %1495 = vmatprep.mubr.bf16.mxu0 0
      %1496 = vmatmul.mubr.bf16.gmra.mrb[0].mxu0 %v1391
      %v1497 = vpop.f32.mrb[0].mxu0
      %v1498 = vadd.f32 0.0, %v1497
      %v1499 = vpop.f32.mrb[0].mxu0
      %v1500 = vpop.f32.mrb[0].mxu0
      %v1501 = vpop.f32.mrb[0].mxu0
      %1502 = vdwg.mxu0
      %v1503 = vlaneseq
      %v1504 = vshrl.u32 %v1503, 7
      %v1505 = vsub.s32 0, %v1504
      %v1506 = vrot.slane %v1498, %v1505
      %v1507 = vmul.f32 %v823, %v1506
      %v1508 = vmul.f32 %v824, %v1506
      %v1509 = vmul.f32 %v825, %v1506
      %v1510 = vmul.f32 %v826, %v1506
      %v1511 = vmul.f32 %v827, %v1506
      %v1512 = vmul.f32 %v828, %v1506
      %v1513 = vmul.f32 %v829, %v1506
      %v1514 = vmul.f32 %v830, %v1506
      %v1515 = vmul.f32 %v831, %v1506
      %v1516 = vmul.f32 %v832, %v1506
      %v1517 = vmul.f32 %v833, %v1506
      %v1518 = vmul.f32 %v834, %v1506
      %v1519 = vmul.f32 %v835, %v1506
      %v1520 = vmul.f32 %v836, %v1506
      %v1521 = vmul.f32 %v837, %v1506
      %v1522 = vmul.f32 %v838, %v1506
      %v1523 = vmul.f32 %v1507, %v1507
      %v1524 = vmul.f32 %v1508, %v1508
      %v1525 = vmul.f32 %v1509, %v1509
      %v1526 = vmul.f32 %v1510, %v1510
      %v1527 = vmul.f32 %v1511, %v1511
      %v1528 = vmul.f32 %v1512, %v1512
      %v1529 = vmul.f32 %v1513, %v1513
      %v1530 = vmul.f32 %v1514, %v1514
      %v1531 = vmul.f32 %v1515, %v1515
      %v1532 = vmul.f32 %v1516, %v1516
      %v1533 = vmul.f32 %v1517, %v1517
      %v1534 = vmul.f32 %v1518, %v1518
      %v1535 = vmul.f32 %v1519, %v1519
      %v1536 = vmul.f32 %v1520, %v1520
      %v1537 = vmul.f32 %v1521, %v1521
      %v1538 = vmul.f32 %v1522, %v1522
      %v1539 = vsel %vm1120, %v1523, 0.0
      %v1540 = vsel %vm1120, %v1524, 0.0
      %v1541 = vadd.f32 %v1539, %v1540
      %v1542 = vsel %vm1120, %v1525, 0.0
      %v1543 = vadd.f32 %v1541, %v1542
      %v1544 = vsel %vm1120, %v1526, 0.0
      %v1545 = vadd.f32 %v1543, %v1544
      %v1546 = vsel %vm1120, %v1527, 0.0
      %v1547 = vadd.f32 %v1545, %v1546
      %v1548 = vsel %vm1120, %v1528, 0.0
      %v1549 = vadd.f32 %v1547, %v1548
      %v1550 = vsel %vm1120, %v1529, 0.0
      %v1551 = vadd.f32 %v1549, %v1550
      %v1552 = vsel %vm1120, %v1530, 0.0
      %v1553 = vadd.f32 %v1551, %v1552
      %v1554 = vsel %vm1120, %v1531, 0.0
      %v1555 = vadd.f32 %v1553, %v1554
      %v1556 = vsel %vm1120, %v1532, 0.0
      %v1557 = vadd.f32 %v1555, %v1556
      %v1558 = vsel %vm1120, %v1533, 0.0
      %v1559 = vadd.f32 %v1557, %v1558
      %v1560 = vsel %vm1120, %v1534, 0.0
      %v1561 = vadd.f32 %v1559, %v1560
      %v1562 = vsel %vm1120, %v1535, 0.0
      %v1563 = vadd.f32 %v1561, %v1562
      %v1564 = vsel %vm1120, %v1536, 0.0
      %v1565 = vadd.f32 %v1563, %v1564
      %v1566 = vsel %vm1120, %v1537, 0.0
      %v1567 = vadd.f32 %v1565, %v1566
      %v1568 = vsel %vm1120, %v1538, 0.0
      %v1569 = vadd.f32 %v1567, %v1568
      %v1570 = vrot.slane %v1569, 4
      %v1571 = vadd.f32 %v1569, %v1570
      %v1572 = vrot.slane %v1571, 2
      %v1573 = vadd.f32 %v1571, %v1572
      %v1574 = vrot.slane %v1573, 1
      %v1575 = vadd.f32 %v1573, %v1574
      %v1576 = vlaneseq
      %v1577 = vand.u32 %v1576, 127
      %vm1578 = vcmp.ge.s32.totalorder %v1577, 0
      %vm1579 = vcmp.lt.s32.totalorder %v1577, 16
      %vm1580 = vmand %vm1578, %vm1579
      %v1581 = vsel %vm1580, %v1575, 0.0
      %vm1582 = vcmask 253952
      %v1583 = vsel %vm1582, %v1581, 0.0
      %1584 = vadd.xlane.f32.xlu0 %v1583
      %v1585 = vpop.xlane.xlu0 %1584
      %v1586 = vrot.slane %v1585, 4
      %v1587 = vadd.f32 %v1585, %v1586
      %v1588 = vrot.slane %v1587, 2
      %v1589 = vadd.f32 %v1587, %v1588
      %v1590 = vrot.slane %v1589, 1
      %v1591 = vadd.f32 %v1589, %v1590
      %s1592 = vtos %v1591
      %v1593 = vstv %s1592
      %v1594 = vsel %vm1580, %v1593, 0.0
      %vm1595 = vcmp.ge.s32.totalorder %v1577, 16
      %vm1596 = vcmp.lt.s32.totalorder %v1577, 32
      %vm1597 = vmand %vm1595, %vm1596
      %v1598 = vsel %vm1597, %v1575, 0.0
      %v1599 = vsel %vm1582, %v1598, 0.0
      %1600 = vadd.xlane.f32.xlu0 %v1599
      %v1601 = vpop.xlane.xlu0 %1600
      %v1602 = vrot.slane %v1601, 4
      %v1603 = vadd.f32 %v1601, %v1602
      %v1604 = vrot.slane %v1603, 2
      %v1605 = vadd.f32 %v1603, %v1604
      %v1606 = vrot.slane %v1605, 1
      %v1607 = vadd.f32 %v1605, %v1606
      %s1608 = vtos %v1607
      %v1609 = vstv %s1608
      %v1610 = vsel %vm1597, %v1609, %v1594
      %v1611 = vadd.f32 %v1610, 1e-05
      %v1612 = vrsqrt.pop %v1611
      %v1613 = vmul.f32 %v1507, %v1612
      %v1614 = vmul.f32 %v1508, %v1612
      %v1615 = vmul.f32 %v1509, %v1612
      %v1616 = vmul.f32 %v1510, %v1612
      %v1617 = vmul.f32 %v1511, %v1612
      %v1618 = vmul.f32 %v1512, %v1612
      %v1619 = vmul.f32 %v1513, %v1612
      %v1620 = vmul.f32 %v1514, %v1612
      %v1621 = vmul.f32 %v1515, %v1612
      %v1622 = vmul.f32 %v1516, %v1612
      %v1623 = vmul.f32 %v1517, %v1612
      %v1624 = vmul.f32 %v1518, %v1612
      %v1625 = vmul.f32 %v1519, %v1612
      %v1626 = vmul.f32 %v1520, %v1612
      %v1627 = vmul.f32 %v1521, %v1612
      %v1628 = vmul.f32 %v1522, %v1612
      %v1629 = vadd.f32 %v823, %v1434
      %v1630 = vadd.f32 %v824, %v1437
      %v1631 = vadd.f32 %v825, %v1442
      %v1632 = vadd.f32 %v826, %v1445
      %v1633 = vadd.f32 %v827, %v1450
      %v1634 = vadd.f32 %v828, %v1453
      %v1635 = vadd.f32 %v829, %v1458
      %v1636 = vadd.f32 %v830, %v1461
      %v1637 = vadd.f32 %v831, %v1466
      %v1638 = vadd.f32 %v832, %v1469
      %v1639 = vadd.f32 %v833, %v1474
      %v1640 = vadd.f32 %v834, %v1477
      %v1641 = vadd.f32 %v835, %v1482
      %v1642 = vadd.f32 %v836, %v1485
      %v1643 = vadd.f32 %v837, %v1490
      %v1644 = vadd.f32 %v838, %v1493
      %v1645 = vmul.f32 %v1629, %v1629
      %v1646 = vmul.f32 %v1630, %v1630
      %v1647 = vmul.f32 %v1631, %v1631
      %v1648 = vmul.f32 %v1632, %v1632
      %v1649 = vmul.f32 %v1633, %v1633
      %v1650 = vmul.f32 %v1634, %v1634
      %v1651 = vmul.f32 %v1635, %v1635
      %v1652 = vmul.f32 %v1636, %v1636
      %v1653 = vmul.f32 %v1637, %v1637
      %v1654 = vmul.f32 %v1638, %v1638
      %v1655 = vmul.f32 %v1639, %v1639
      %v1656 = vmul.f32 %v1640, %v1640
      %v1657 = vmul.f32 %v1641, %v1641
      %v1658 = vmul.f32 %v1642, %v1642
      %v1659 = vmul.f32 %v1643, %v1643
      %v1660 = vmul.f32 %v1644, %v1644
      %v1661 = vsel %vm1120, %v1645, 0.0
      %v1662 = vsel %vm1120, %v1646, 0.0
      %v1663 = vadd.f32 %v1661, %v1662
      %v1664 = vsel %vm1120, %v1647, 0.0
      %v1665 = vadd.f32 %v1663, %v1664
      %v1666 = vsel %vm1120, %v1648, 0.0
      %v1667 = vadd.f32 %v1665, %v1666
      %v1668 = vsel %vm1120, %v1649, 0.0
      %v1669 = vadd.f32 %v1667, %v1668
      %v1670 = vsel %vm1120, %v1650, 0.0
      %v1671 = vadd.f32 %v1669, %v1670
      %v1672 = vsel %vm1120, %v1651, 0.0
      %v1673 = vadd.f32 %v1671, %v1672
      %v1674 = vsel %vm1120, %v1652, 0.0
      %v1675 = vadd.f32 %v1673, %v1674
      %v1676 = vsel %vm1120, %v1653, 0.0
      %v1677 = vadd.f32 %v1675, %v1676
      %v1678 = vsel %vm1120, %v1654, 0.0
      %v1679 = vadd.f32 %v1677, %v1678
      %v1680 = vsel %vm1120, %v1655, 0.0
      %v1681 = vadd.f32 %v1679, %v1680
      %v1682 = vsel %vm1120, %v1656, 0.0
      %v1683 = vadd.f32 %v1681, %v1682
      %v1684 = vsel %vm1120, %v1657, 0.0
      %v1685 = vadd.f32 %v1683, %v1684
      %v1686 = vsel %vm1120, %v1658, 0.0
      %v1687 = vadd.f32 %v1685, %v1686
      %v1688 = vsel %vm1120, %v1659, 0.0
      %v1689 = vadd.f32 %v1687, %v1688
      %v1690 = vsel %vm1120, %v1660, 0.0
      %v1691 = vadd.f32 %v1689, %v1690
      %v1692 = vrot.slane %v1691, 4
      %v1693 = vadd.f32 %v1691, %v1692
      %v1694 = vrot.slane %v1693, 2
      %v1695 = vadd.f32 %v1693, %v1694
      %v1696 = vrot.slane %v1695, 1
      %v1697 = vadd.f32 %v1695, %v1696
      %v1698 = vsel %vm1580, %v1697, 0.0
      %v1699 = vsel %vm1582, %v1698, 0.0
      %1700 = vadd.xlane.f32.xlu0 %v1699
      %v1701 = vpop.xlane.xlu0 %1700
      %v1702 = vrot.slane %v1701, 4
      %v1703 = vadd.f32 %v1701, %v1702
      %v1704 = vrot.slane %v1703, 2
      %v1705 = vadd.f32 %v1703, %v1704
      %v1706 = vrot.slane %v1705, 1
      %v1707 = vadd.f32 %v1705, %v1706
      %s1708 = vtos %v1707
      %v1709 = vstv %s1708
      %v1710 = vsel %vm1580, %v1709, 0.0
      %v1711 = vsel %vm1597, %v1697, 0.0
      %v1712 = vsel %vm1582, %v1711, 0.0
      %1713 = vadd.xlane.f32.xlu0 %v1712
      %v1714 = vpop.xlane.xlu0 %1713
      %v1715 = vrot.slane %v1714, 4
      %v1716 = vadd.f32 %v1714, %v1715
      %v1717 = vrot.slane %v1716, 2
      %v1718 = vadd.f32 %v1716, %v1717
      %v1719 = vrot.slane %v1718, 1
      %v1720 = vadd.f32 %v1718, %v1719
      %s1721 = vtos %v1720
      %v1722 = vstv %s1721
      %v1723 = vsel %vm1597, %v1722, %v1710
      %v1724 = vadd.f32 %v1723, 1e-05
      %v1725 = vrsqrt.pop %v1724
      %v1726 = vmul.f32 %v1629, %v1725
      %v1727 = vmul.f32 %v1630, %v1725
      %v1728 = vmul.f32 %v1631, %v1725
      %v1729 = vmul.f32 %v1632, %v1725
      %v1730 = vmul.f32 %v1633, %v1725
      %v1731 = vmul.f32 %v1634, %v1725
      %v1732 = vmul.f32 %v1635, %v1725
      %v1733 = vmul.f32 %v1636, %v1725
      %v1734 = vmul.f32 %v1637, %v1725
      %v1735 = vmul.f32 %v1638, %v1725
      %v1736 = vmul.f32 %v1639, %v1725
      %v1737 = vmul.f32 %v1640, %v1725
      %v1738 = vmul.f32 %v1641, %v1725
      %v1739 = vmul.f32 %v1642, %v1725
      %v1740 = vmul.f32 %v1643, %v1725
      %v1741 = vmul.f32 %v1644, %v1725
      %v1742 = vadd.f32 %v1613, %v1726
      %v1743 = vadd.f32 %v1614, %v1727
      %v1744 = vadd.f32 %v1615, %v1728
      %v1745 = vadd.f32 %v1616, %v1729
      %v1746 = vadd.f32 %v1617, %v1730
      %v1747 = vadd.f32 %v1618, %v1731
      %v1748 = vadd.f32 %v1619, %v1732
      %v1749 = vadd.f32 %v1620, %v1733
      %v1750 = vadd.f32 %v1621, %v1734
      %v1751 = vadd.f32 %v1622, %v1735
      %v1752 = vadd.f32 %v1623, %v1736
      %v1753 = vadd.f32 %v1624, %v1737
      %v1754 = vadd.f32 %v1625, %v1738
      %v1755 = vadd.f32 %v1626, %v1739
      %v1756 = vadd.f32 %v1627, %v1740
      %v1757 = vadd.f32 %v1628, %v1741
      %v1758 = vmul.f32 %v1742, %v1742
      %v1759 = vmul.f32 %v1743, %v1743
      %v1760 = vmul.f32 %v1744, %v1744
      %v1761 = vmul.f32 %v1745, %v1745
      %v1762 = vmul.f32 %v1746, %v1746
      %v1763 = vmul.f32 %v1747, %v1747
      %v1764 = vmul.f32 %v1748, %v1748
      %v1765 = vmul.f32 %v1749, %v1749
      %v1766 = vmul.f32 %v1750, %v1750
      %v1767 = vmul.f32 %v1751, %v1751
      %v1768 = vmul.f32 %v1752, %v1752
      %v1769 = vmul.f32 %v1753, %v1753
      %v1770 = vmul.f32 %v1754, %v1754
      %v1771 = vmul.f32 %v1755, %v1755
      %v1772 = vmul.f32 %v1756, %v1756
      %v1773 = vmul.f32 %v1757, %v1757
      %v1774 = vsel %vm1120, %v1758, 0.0
      %v1775 = vsel %vm1120, %v1759, 0.0
      %v1776 = vadd.f32 %v1774, %v1775
      %v1777 = vsel %vm1120, %v1760, 0.0
      %v1778 = vadd.f32 %v1776, %v1777
      %v1779 = vsel %vm1120, %v1761, 0.0
      %v1780 = vadd.f32 %v1778, %v1779
      %v1781 = vsel %vm1120, %v1762, 0.0
      %v1782 = vadd.f32 %v1780, %v1781
      %v1783 = vsel %vm1120, %v1763, 0.0
      %v1784 = vadd.f32 %v1782, %v1783
      %v1785 = vsel %vm1120, %v1764, 0.0
      %v1786 = vadd.f32 %v1784, %v1785
      %v1787 = vsel %vm1120, %v1765, 0.0
      %v1788 = vadd.f32 %v1786, %v1787
      %v1789 = vsel %vm1120, %v1766, 0.0
      %v1790 = vadd.f32 %v1788, %v1789
      %v1791 = vsel %vm1120, %v1767, 0.0
      %v1792 = vadd.f32 %v1790, %v1791
      %v1793 = vsel %vm1120, %v1768, 0.0
      %v1794 = vadd.f32 %v1792, %v1793
      %v1795 = vsel %vm1120, %v1769, 0.0
      %v1796 = vadd.f32 %v1794, %v1795
      %v1797 = vsel %vm1120, %v1770, 0.0
      %v1798 = vadd.f32 %v1796, %v1797
      %v1799 = vsel %vm1120, %v1771, 0.0
      %v1800 = vadd.f32 %v1798, %v1799
      %v1801 = vsel %vm1120, %v1772, 0.0
      %v1802 = vadd.f32 %v1800, %v1801
      %v1803 = vsel %vm1120, %v1773, 0.0
      %v1804 = vadd.f32 %v1802, %v1803
      %v1805 = vrot.slane %v1804, 4
      %v1806 = vadd.f32 %v1804, %v1805
      %v1807 = vrot.slane %v1806, 2
      %v1808 = vadd.f32 %v1806, %v1807
      %v1809 = vrot.slane %v1808, 1
      %v1810 = vadd.f32 %v1808, %v1809
      %v1811 = vsel %vm1580, %v1810, 0.0
      %v1812 = vsel %vm1582, %v1811, 0.0
      %1813 = vadd.xlane.f32.xlu0 %v1812
      %v1814 = vpop.xlane.xlu0 %1813
      %v1815 = vrot.slane %v1814, 4
      %v1816 = vadd.f32 %v1814, %v1815
      %v1817 = vrot.slane %v1816, 2
      %v1818 = vadd.f32 %v1816, %v1817
      %v1819 = vrot.slane %v1818, 1
      %v1820 = vadd.f32 %v1818, %v1819
      %s1821 = vtos %v1820
      %v1822 = vstv %s1821
      %v1823 = vsel %vm1580, %v1822, 0.0
      %v1824 = vsel %vm1597, %v1810, 0.0
      %v1825 = vsel %vm1582, %v1824, 0.0
      %1826 = vadd.xlane.f32.xlu0 %v1825
      %v1827 = vpop.xlane.xlu0 %1826
      %v1828 = vrot.slane %v1827, 4
      %v1829 = vadd.f32 %v1827, %v1828
      %v1830 = vrot.slane %v1829, 2
      %v1831 = vadd.f32 %v1829, %v1830
      %v1832 = vrot.slane %v1831, 1
      %v1833 = vadd.f32 %v1831, %v1832
      %s1834 = vtos %v1833
      %v1835 = vstv %s1834
      %v1836 = vsel %vm1597, %v1835, %v1823
      %v1837 = vadd.f32 %v1836, 1e-05
      %v1838 = vrsqrt.pop %v1837
      %v1839 = vmul.f32 %v1742, %v1838
      %v1840 = vmul.f32 %v1743, %v1838
      %v1841 = vmul.f32 %v1744, %v1838
      %v1842 = vmul.f32 %v1745, %v1838
      %v1843 = vmul.f32 %v1746, %v1838
      %v1844 = vmul.f32 %v1747, %v1838
      %v1845 = vmul.f32 %v1748, %v1838
      %v1846 = vmul.f32 %v1749, %v1838
      %v1847 = vmul.f32 %v1750, %v1838
      %v1848 = vmul.f32 %v1751, %v1838
      %v1849 = vmul.f32 %v1752, %v1838
      %v1850 = vmul.f32 %v1753, %v1838
      %v1851 = vmul.f32 %v1754, %v1838
      %v1852 = vmul.f32 %v1755, %v1838
      %v1853 = vmul.f32 %v1756, %v1838
      %v1854 = vmul.f32 %v1757, %v1838
      %1855 = vst.msk [vmem:[%s289] sm:$0xff] %vm1120, %v1839
      %1856 = vst.msk [vmem:[%s289 + $0x8] sm:$0xff] %vm1120, %v1840
      %1857 = vst.msk [vmem:[%s289 + $0x10] sm:$0xff] %vm1120, %v1841
      %1858 = vst.msk [vmem:[%s289 + $0x18] sm:$0xff] %vm1120, %v1842
      %1859 = vst.msk [vmem:[%s289 + $0x20] sm:$0xff] %vm1120, %v1843
      %1860 = vst.msk [vmem:[%s289 + $0x28] sm:$0xff] %vm1120, %v1844
      %1861 = vst.msk [vmem:[%s289 + $0x30] sm:$0xff] %vm1120, %v1845
      %1862 = vst.msk [vmem:[%s289 + $0x38] sm:$0xff] %vm1120, %v1846
      %1863 = vst.msk [vmem:[%s289 + $0x40] sm:$0xff] %vm1120, %v1847
      %1864 = vst.msk [vmem:[%s289 + $0x48] sm:$0xff] %vm1120, %v1848
      %1865 = vst.msk [vmem:[%s289 + $0x50] sm:$0xff] %vm1120, %v1849
      %1866 = vst.msk [vmem:[%s289 + $0x58] sm:$0xff] %vm1120, %v1850
      %1867 = vst.msk [vmem:[%s289 + $0x60] sm:$0xff] %vm1120, %v1851
      %1868 = vst.msk [vmem:[%s289 + $0x68] sm:$0xff] %vm1120, %v1852
      %1869 = vst.msk [vmem:[%s289 + $0x70] sm:$0xff] %vm1120, %v1853
      %1870 = vst.msk [vmem:[%s289 + $0x78] sm:$0xff] %vm1120, %v1854
      %p1871 = scmp.lt.s32.totalorder %s20, 1
      %s1872 = scalar_select %p1871, %s20, 1
      %p1873 = scmp.lt.s32.totalorder %s21, 0
      %s1874 = scalar_select %p1873, %s21, 0
      %s1875 = smul.addr %s1872, 16
      %s1876 = sadd.s32 %s1874, %s1875
      %s1877 = smul.addr %s1876, 8
      %s1878 = scalar_lea.vmem %s5, %s1877
      // Predicated region
      $region45: #{tpu_custom_call.1} parent=39 // pred_check
        %p1879 = pneg %p170
      $region46: #{tpu_custom_call.1} parent=39 // pred_check_branch
        %1881 = sbr.rel (%p1879) target = $region48
      $region47: #{tpu_custom_call.1} parent=39 // pred_region
        _
      $region48: #{tpu_custom_call.1} parent=39 // pred_fallthru
        _
    $region40: #{tpu_custom_call.1} parent=5 // pred_fallthru
      _
    %p1882 = scmp.le.s32.totalorder 2, %s11
    // Predicated region
    $region49: #{tpu_custom_call.1} parent=5 // pred_check
      %p1883 = pneg %p1882
    $region50: #{tpu_custom_call.1} parent=5 // pred_check_branch
      %1885 = sbr.rel (%p1883) target = $region52
    $region51: #{tpu_custom_call.1} parent=5 // pred_region
      %s1886 = ssub.s32 %s11, 2
      // Predicated region
      $region53: #{tpu_custom_call.1} parent=51 // pred_check
        %p1887 = pneg %p176
      $region54: #{tpu_custom_call.1} parent=51 // pred_check_branch
        %1889 = sbr.rel (%p1887) target = $region56
      $region55: #{tpu_custom_call.1} parent=51 // pred_region
        %p1890 = scmp.lt.s32.totalorder %s22, 1
        %s1891 = scalar_select %p1890, %s22, 1
        %p1892 = scmp.lt.s32.totalorder %s23, 0
        %s1893 = scalar_select %p1892, %s23, 0
        %s1894 = smul.addr %s1891, 16
        %s1895 = sadd.s32 %s1893, %s1894
        %s1896 = smul.addr %s1895, 8
        %s1897 = scalar_lea.vmem %s5, %s1896
      $region56: #{tpu_custom_call.1} parent=51 // pred_fallthru
        _
    $region52: #{tpu_custom_call.1} parent=5 // pred_fallthru
      _
  $region6: #{tpu_custom_call.1} parent=0 // loop_footer
    %s15 = sadd.s32 1, %s11
  $region7: #{tpu_custom_call.1} parent=0 // loop_footer_branch
    %10 = sbr.rel target = $region3
  $region8: #{tpu_custom_call.1} parent=0 // loop_exit
    _

</llo_original>
